<compile_context>
chip_gen: v6e
topology: v6e:2x2x1
jax: 0.10.0
libtpu: 0.0.40
codegen_flags: <defaults>
</compile_context>

<pallas_src>
import functools
import math

import jax
import jax.numpy as jnp
from jax.experimental import pallas as pl
from jax.experimental.pallas import tpu as pltpu

SQRT_HALF = math.sqrt(0.5)
KSIZE = 5            # self.kernel_size
DROPOUT = 0.1
BN_EPS = 1e-5


def _round_up(x, m):
    return ((x + m - 1) // m) * m


def _cdiv(a, b):
    return (a + b - 1) // b


# Probe pl.Buffered / pipeline_mode support (single-buffer constant weights).
try:
    pl.BlockSpec((8, 128), lambda i: (0, 0), pipeline_mode=pl.Buffered(1))
    _HAS_BUFFERED = True
except Exception:            # pragma: no cover - older jax fallback
    _HAS_BUFFERED = False


# ----------------------------------------------------------------------------
# Pallas kernel: full convcap forward for b_tile batch elements per grid step.
# ----------------------------------------------------------------------------
def convcap_kernel(
    S,               # true (unpadded) spatial size, static
    # inputs
    wordemb_ref,     # (Bt, Tp, F)   bf16  gathered emb_0 rows
    imgsfeats_ref,   # (Bt, F, Sp)   bf16  image feature map (flat, lane-dense)
    imgsfc7_ref,     # (Bt, 1, F)    f32   image fc7 feature
    emb1_w_ref,      # (F, F)        bf16
    emb1_b_ref,      # (1, F)        f32
    resproj_w_ref,   # (2F, F)       bf16
    resproj_b_ref,   # (1, F)        f32
    conv_w_ref,      # (K, 2F, 2F)   bf16  causal conv taps
    conv_b_ref,      # (1, 2F)       f32
    cls0_w_ref,      # (F, F//2)     bf16
    cls0_b_ref,      # (1, F//2)     f32
    cls1_w_ref,      # (F//2, Vp)    bf16
    cls1_b_ref,      # (1, Vp)       f32
    bn_scale_ref,    # (1, F)        f32   folded eval-mode BatchNorm scale
    bn_shift_ref,    # (1, F)        f32   folded eval-mode BatchNorm shift
    # outputs
    logits_ref,      # (Bt, Tp, Vp)  f32
    mm_ref,          # (Bt, Tp, F)   f32
    attn_ref,        # (Bt, Tp, Sp)  f32
):
    Bt, Tp, F_ = wordemb_ref.shape
    Sp = imgsfeats_ref.shape[2]
    Vp = logits_ref.shape[2]
    K = conv_w_ref.shape[0]
    F2 = conv_w_ref.shape[1]                 # 2F
    pad = K - 1
    M = Bt * Tp
    bf16 = jnp.bfloat16

    def mxu(a_bf16, w_ref, b_ref):
        # bf16 operands, f32 accumulation on the MXU.
        return (jnp.dot(a_bf16, w_ref[...],
                        preferred_element_type=jnp.float32) + b_ref[0, :])

    # ---- 1) emb_1 linear on the stacked (M, F) word-embedding rows
    wordemb = mxu(wordemb_ref[...].reshape(M, F_), emb1_w_ref, emb1_b_ref)

    # ---- 2) concat [wordemb ; broadcast(imgsfc7)] along features
    y_b = jnp.broadcast_to(imgsfc7_ref[...], (Bt, Tp, F_)).reshape(M, F_)
    xcat = jnp.concatenate([wordemb, y_b], axis=1)              # (M, 2F) f32
    xcat_bf = xcat.astype(bf16)

    # ---- 3) residual projection (first-layer residual path)
    residual = mxu(xcat_bf, resproj_w_ref, resproj_b_ref)       # (M, F)

    # ---- 4) causal Conv1d (kernel K, left pad K-1) + GLU as K accumulating
    # (M,2F)x(2F,2F) bf16 matmuls (no 5x-replicated activation stack in VMEM).
    xpad = jnp.concatenate(
        [jnp.zeros((Bt, pad, F2), bf16), xcat_bf.reshape(Bt, Tp, F2)],
        axis=1)                                                 # (Bt, Tp+pad, 2F)
    conv_acc = jnp.zeros((M, F2), jnp.float32)
    for k in range(K):                                          # K=5, static
        xk = xpad[:, k:k + Tp, :].reshape(M, F2)
        conv_acc = conv_acc + jnp.dot(xk, conv_w_ref[k],
                                      preferred_element_type=jnp.float32)
    conv_out = conv_acc + conv_b_ref[0, :]
    x = conv_out[:, :F_] * jax.nn.sigmoid(conv_out[:, F_:])     # GLU -> (M, F)

    # ---- 5) AttentionLayer (batched over the Bt tile)
    att_res = x
    xa = ((x + wordemb) * SQRT_HALF).reshape(Bt, Tp, F_).astype(bf16)
    yfeat = imgsfeats_ref[...]                                  # (Bt, F, Sp) bf16
    scores = jnp.einsum('btf,bfs->bts', xa, yfeat,
                        preferred_element_type=jnp.float32)     # (Bt, Tp, Sp)
    if Sp > S:   # mask the zero-padded spatial columns before the softmax
        col = jax.lax.broadcasted_iota(jnp.int32, (1, 1, Sp), 2)
        scores = jnp.where(col < S, scores, jnp.float32(-1e30))
    m = jnp.max(scores, axis=-1, keepdims=True)
    e = jnp.exp(scores - m)
    denom = jnp.sum(e, axis=-1, keepdims=True)
    p = e / denom        # exact: attn is returned as probabilities downstream
    attn_ref[...] = p                                           # lane-dense store
    ctx = jnp.einsum('bts,bfs->btf', p.astype(bf16), yfeat,
                     preferred_element_type=jnp.float32)        # (Bt, Tp, F)
    ctx = ctx * (S * math.sqrt(1.0 / S))
    x = (ctx.reshape(M, F_) + att_res) * SQRT_HALF
    x = (x + residual) * SQRT_HALF                              # (M, F)

    # ---- 6) multimodal feature + eval-mode BatchNorm (folded scale/shift)
    mm = (x + y_b) * bn_scale_ref[0, :] + bn_shift_ref[0, :]
    mm_ref[...] = mm.reshape(Bt, Tp, F_)

    # ---- 7) classifier (dropout between the two linears is identity in eval)
    h = mxu(x.astype(bf16), cls0_w_ref, cls0_b_ref)             # (M, F//2)
    logits = mxu(h.astype(bf16), cls1_w_ref, cls1_b_ref)        # (M, Vp)
    logits_ref[...] = logits.reshape(Bt, Tp, Vp)


# ----------------------------------------------------------------------------
# Per-generation knobs: MXU M-target, VMEM limit, number of TensorCores.
# ----------------------------------------------------------------------------
def _hw_knobs():
    try:
        kind = jax.devices()[0].device_kind.lower()
    except Exception:
        kind = ""
    is_v5e = ("v5 lite" in kind) or ("v5e" in kind) or ("v5litepod" in kind)
    is_v7 = "7" in kind
    m_target = 128 if is_v5e else 256        # v5e MXU 4x128^2; v6e/v7x 2x256^2
    try:
        vmem_cap = int(pltpu.get_tpu_info().vmem_capacity_bytes)
    except Exception:
        vmem_cap = (64 if is_v7 else 128) * 1024 * 1024
    vmem_limit = (vmem_cap * 7) // 8         # headroom for compiler scratch
    n_cores = 2 if is_v7 else 1              # v7x: 2 TensorCores per chip
    return m_target, vmem_limit, n_cores


# ----------------------------------------------------------------------------
# Wrapper
# ----------------------------------------------------------------------------
def convcap_forward(params, imgsfeats, imgsfc7, wordclass, b_tile=None):
    B, F_, fh, fw = imgsfeats.shape
    S = fh * fw
    T = wordclass.shape[1]
    V = params["emb"].shape[0]
    K = params["conv_w"].shape[0]
    F2 = 2 * F_
    half = params["cls0_w"].shape[1]

    f32, bf16 = jnp.float32, jnp.bfloat16
    m_target, vmem_limit, n_cores = _hw_knobs()

    # Pad T to a sublane multiple, S / V to lane-dense widths; pick a batch
    # tile so M = b_tile*Tp ~ m_target; on v7x keep >= n_cores grid steps so
    # the "parallel" axis really splits across both TensorCores.
    Tp = _round_up(T, 8)
    Sp = _round_up(S, 128)
    Vp = _round_up(V, 128)
    if b_tile is None:
        b_tile = max(1, min(B, m_target // Tp))
        if B >= n_cores:
            b_tile = max(1, min(b_tile, _cdiv(B, n_cores)))
    Bp = _round_up(B, b_tile)

    wc = jnp.pad(wordclass.astype(jnp.int32), ((0, Bp - B), (0, Tp - T)))
    # Embedding gather (emb_0, padding_idx=0 row is zero) done as an XLA
    # gather; the rows then stream into the kernel through the double-buffered
    # BlockSpec pipeline (tile i+1 prefetched while tile i computes), which
    # hides the gather on all generations and is megacore-safe.
    wemb_raw = params["emb"][wc].astype(bf16)                  # (Bp, Tp, F)

    imgs = jnp.pad(imgsfeats.reshape(B, F_, S).astype(bf16),
                   ((0, Bp - B), (0, 0), (0, Sp - S)))
    fc7 = jnp.pad(imgsfc7.reshape(B, 1, F_).astype(f32),
                  ((0, Bp - B), (0, 0), (0, 0)))

    emb1_w = params["emb1_w"].astype(bf16)
    resproj_w = params["resproj_w"].astype(bf16)
    conv_w = params["conv_w"].astype(bf16)                     # (K, 2F, 2F)
    cls0_w = params["cls0_w"].astype(bf16)
    cls1_w = jnp.pad(params["cls1_w"].astype(bf16), ((0, 0), (0, Vp - V)))
    emb1_b = params["emb1_b"].astype(f32)
    resproj_b = params["resproj_b"].astype(f32)
    conv_b = params["conv_b"].astype(f32)
    cls0_b = params["cls0_b"].astype(f32)
    cls1_b = jnp.pad(params["cls1_b"].astype(f32), ((0, 0), (0, Vp - V)))
    bn_scale = params["bn_scale"].astype(f32)
    bn_shift = params["bn_shift"].astype(f32)

    # Constant weights: constant index_map -> fetched once; Buffered(1) keeps
    # a single VMEM copy instead of the default double buffer.
    # TODO(synk): at production sizes (F=2048 -> conv_w ~167 MB bf16, V~9.2K)
    # conv_w / cls1_w must be streamed over an extra "arbitrary" grid axis
    # with a VMEM accumulator instead of being whole-resident; not needed at
    # the sizes exercised here.
    def const_spec(shape):
        nd = len(shape)
        idx = lambda i, _nd=nd: (0,) * _nd
        if _HAS_BUFFERED:
            return pl.BlockSpec(shape, idx, pipeline_mode=pl.Buffered(1))
        return pl.BlockSpec(shape, idx)

    in_specs = [
        pl.BlockSpec((b_tile, Tp, F_), lambda i: (i, 0, 0)),   # wordemb rows
        pl.BlockSpec((b_tile, F_, Sp), lambda i: (i, 0, 0)),   # imgsfeats
        pl.BlockSpec((b_tile, 1, F_), lambda i: (i, 0, 0)),    # imgsfc7
        const_spec((F_, F_)), const_spec((1, F_)),             # emb_1
        const_spec((F2, F_)), const_spec((1, F_)),             # resproj
        const_spec((K, F2, F2)), const_spec((1, F2)),          # conv
        const_spec((F_, half)), const_spec((1, half)),         # cls0
        const_spec((half, Vp)), const_spec((1, Vp)),           # cls1
        const_spec((1, F_)), const_spec((1, F_)),              # bn
    ]
    out_specs = [
        pl.BlockSpec((b_tile, Tp, Vp), lambda i: (i, 0, 0)),
        pl.BlockSpec((b_tile, Tp, F_), lambda i: (i, 0, 0)),
        pl.BlockSpec((b_tile, Tp, Sp), lambda i: (i, 0, 0)),
    ]
    out_shape = [
        jax.ShapeDtypeStruct((Bp, Tp, Vp), f32),
        jax.ShapeDtypeStruct((Bp, Tp, F_), f32),
        jax.ShapeDtypeStruct((Bp, Tp, Sp), f32),
    ]

    logits, mm, attn = pl.pallas_call(
        functools.partial(convcap_kernel, S),
        out_shape=out_shape,
        grid_spec=pltpu.PrefetchScalarGridSpec(
            num_scalar_prefetch=0,
            grid=(Bp // b_tile,),
            in_specs=in_specs,
            out_specs=out_specs,
        ),
        compiler_params=pltpu.CompilerParams(
            dimension_semantics=("parallel",),     # batch-parallel (v7x megacore)
            vmem_limit_bytes=int(vmem_limit),
        ),
    )(
        wemb_raw, imgs, fc7,
        emb1_w, emb1_b, resproj_w, resproj_b,
        conv_w, conv_b, cls0_w, cls0_b, cls1_w, cls1_b,
        bn_scale, bn_shift,
    )

    # Slice off batch / time / spatial / vocab padding; module returns logits
    # as (B, V, T).
    # TODO(synk): drop this transpose if the consumer accepts (B, T, V).
    logits = logits[:B, :T, :V].transpose(0, 2, 1)
    mm = mm[:B, :T, :]
    attn = attn[:B, :T, :S]
    return logits, mm, attn


# ----------------------------------------------------------------------------
# Deterministic parameter init (shapes from convcap.__init__; weight_norm at
# init is identity so plain tensors suffice).
# ----------------------------------------------------------------------------
def init_params(key, num_wordclass, nfeats, ksize=KSIZE, dropout=DROPOUT):
    ks = jax.random.split(key, 6)
    F_ = nfeats
    V = num_wordclass
    emb = jax.random.normal(ks[0], (V, F_), jnp.float32) * 0.1
    emb = emb.at[0].set(0.0)                       # padding_idx = 0
    conv_std = math.sqrt(4.0 * (1.0 - dropout) / (ksize * 2 * F_))
    params = dict(
        emb=emb,
        emb1_w=jax.random.normal(ks[1], (F_, F_), jnp.float32)
        * math.sqrt((1.0 - dropout) / F_),
        emb1_b=jnp.zeros((1, F_), jnp.float32),
        resproj_w=jax.random.normal(ks[2], (2 * F_, F_), jnp.float32)
        * math.sqrt((1.0 - dropout) / (2 * F_)),
        resproj_b=jnp.zeros((1, F_), jnp.float32),
        conv_w=jax.random.normal(ks[3], (ksize, 2 * F_, 2 * F_), jnp.float32)
        * conv_std,
        conv_b=jnp.zeros((1, 2 * F_), jnp.float32),
        cls0_w=jax.random.normal(ks[4], (F_, F_ // 2), jnp.float32)
        * math.sqrt(1.0 / F_),
        cls0_b=jnp.zeros((1, F_ // 2), jnp.float32),
        cls1_w=jax.random.normal(ks[5], (F_ // 2, V), jnp.float32)
        * math.sqrt((1.0 - dropout) / (F_ // 2)),
        cls1_b=jnp.zeros((1, V), jnp.float32),
        # eval-mode BatchNorm1d(nfeats): gamma=1, beta=0, mean=0, var=1
        bn_scale=jnp.full((1, F_), 1.0 / math.sqrt(1.0 + BN_EPS), jnp.float32),
        bn_shift=jnp.zeros((1, F_), jnp.float32),
    )
    return params


# ----------------------------------------------------------------------------
# Plain-JAX reference at the same (bf16 operand / f32 accumulate) precision.
# ----------------------------------------------------------------------------
def _bf16_dot(a, b):
    return jnp.dot(a.astype(jnp.bfloat16), b.astype(jnp.bfloat16),
                   preferred_element_type=jnp.float32)


def convcap_ref(params, imgsfeats, imgsfc7, wordclass):
    B, F_, fh, fw = imgsfeats.shape
    S = fh * fw
    T = wordclass.shape[1]
    K = params["conv_w"].shape[0]
    pad = K - 1
    bf16 = jnp.bfloat16

    wordemb = params["emb"][wordclass]                                   # (B,T,F)
    wordemb = _bf16_dot(wordemb, params["emb1_w"]) + params["emb1_b"][0]
    y = jnp.broadcast_to(imgsfc7[:, None, :], (B, T, F_)).astype(jnp.float32)
    xcat = jnp.concatenate([wordemb, y], axis=-1)                        # (B,T,2F)
    residual = _bf16_dot(xcat, params["resproj_w"]) + params["resproj_b"][0]

    xpad = jnp.pad(xcat, ((0, 0), (pad, 0), (0, 0)))
    acc = jnp.zeros((B, T, 2 * F_), jnp.float32)
    for k in range(K):
        acc = acc + jnp.einsum("bti,io->bto",
                               xpad[:, k:k + T, :].astype(bf16),
                               params["conv_w"][k].astype(bf16),
                               preferred_element_type=jnp.float32)
    conv_out = acc + params["conv_b"][0]
    a, g = conv_out[..., :F_], conv_out[..., F_:]
    x = a * jax.nn.sigmoid(g)

    att_res = x
    xa = (x + wordemb) * SQRT_HALF
    yf = imgsfeats.reshape(B, F_, S)
    scores = jnp.einsum("btf,bfs->bts", xa.astype(bf16), yf.astype(bf16),
                        preferred_element_type=jnp.float32)
    p = jax.nn.softmax(scores, axis=-1)
    ctx = jnp.einsum("bts,bfs->btf", p.astype(bf16), yf.astype(bf16),
                     preferred_element_type=jnp.float32) * (S * math.sqrt(1.0 / S))
    x = (ctx + att_res) * SQRT_HALF
    x = (x + residual) * SQRT_HALF

    mm = (x + y) * params["bn_scale"][0] + params["bn_shift"][0]
    h = _bf16_dot(x, params["cls0_w"]) + params["cls0_b"][0]
    logits = _bf16_dot(h, params["cls1_w"]) + params["cls1_b"][0]
    return logits.transpose(0, 2, 1), mm, p


# ----------------------------------------------------------------------------
if __name__ == "__main__":
    B, T = 2, 8
    nfeats = 128           # small stand-in for 2048
    num_wordclass = 256
    fh = fw = 4

    key = jax.random.PRNGKey(0)
    k1, k2, k3, kp = jax.random.split(key, 4)
    imgsfeats = jax.random.normal(k1, (B, nfeats, fh, fw), jnp.float32)
    imgsfc7 = jax.random.normal(k2, (B, nfeats), jnp.float32)
    wordclass = jax.random.randint(k3, (B, T), 0, num_wordclass)

    params = init_params(kp, num_wordclass, nfeats)

    logits, mm_feat, attn = convcap_forward(params, imgsfeats, imgsfc7, wordclass)
    jax.block_until_ready((logits, mm_feat, attn))

    rl, rm, ra = convcap_ref(params, imgsfeats, imgsfc7, wordclass)
    assert logits.shape == (B, num_wordclass, T)
    assert mm_feat.shape == (B, T, nfeats)
    assert attn.shape == (B, T, fh * fw)
    assert jnp.allclose(logits, rl, atol=2e-2, rtol=2e-2), \
        float(jnp.max(jnp.abs(logits - rl)))
    assert jnp.allclose(mm_feat, rm, atol=2e-2, rtol=2e-2), \
        float(jnp.max(jnp.abs(mm_feat - rm)))
    assert jnp.allclose(attn, ra, atol=2e-2, rtol=2e-2), \
        float(jnp.max(jnp.abs(attn - ra)))

    print("KERNEL_OK")
</pallas_src>

<mosaic_0001>
module attributes {stable_mosaic.version = 11 : i64} {
  func.func @convcap_kernel(%arg0: i32, %arg1: memref<2x8x128xbf16, #tpu.memory_space<vmem>>, %arg2: memref<2x128x128xbf16, #tpu.memory_space<vmem>>, %arg3: memref<2x1x128xf32, #tpu.memory_space<vmem>>, %arg4: memref<128x128xbf16, #tpu.memory_space<vmem>>, %arg5: memref<1x128xf32, #tpu.memory_space<vmem>>, %arg6: memref<256x128xbf16, #tpu.memory_space<vmem>>, %arg7: memref<1x128xf32, #tpu.memory_space<vmem>>, %arg8: memref<5x256x256xbf16, #tpu.memory_space<vmem>>, %arg9: memref<1x256xf32, #tpu.memory_space<vmem>>, %arg10: memref<128x64xbf16, #tpu.memory_space<vmem>>, %arg11: memref<1x64xf32, #tpu.memory_space<vmem>>, %arg12: memref<64x256xbf16, #tpu.memory_space<vmem>>, %arg13: memref<1x256xf32, #tpu.memory_space<vmem>>, %arg14: memref<1x128xf32, #tpu.memory_space<vmem>>, %arg15: memref<1x128xf32, #tpu.memory_space<vmem>>, %arg16: memref<2x8x256xf32, #tpu.memory_space<vmem>>, %arg17: memref<2x8x128xf32, #tpu.memory_space<vmem>>, %arg18: memref<2x8x128xf32, #tpu.memory_space<vmem>>) attributes {dimension_semantics = [#tpu.dimension_semantics<parallel>], iteration_bounds = array<i64: 1>, scalar_prefetch = 0 : i64, scratch_operands = 0 : i64, tpu.core_type = #tpu.core_type<tc>, window_params = [{transform_indices = @transform_0, window_bounds = array<i64: 2, 8, 128>}, {transform_indices = @transform_1, window_bounds = array<i64: 2, 128, 128>}, {transform_indices = @transform_2, window_bounds = array<i64: 2, 1, 128>}, {pipeline_mode = #tpu.pipeline_mode<synchronous>, transform_indices = @transform_3, window_bounds = array<i64: 128, 128>}, {pipeline_mode = #tpu.pipeline_mode<synchronous>, transform_indices = @transform_4, window_bounds = array<i64: 1, 128>}, {pipeline_mode = #tpu.pipeline_mode<synchronous>, transform_indices = @transform_5, window_bounds = array<i64: 256, 128>}, {pipeline_mode = #tpu.pipeline_mode<synchronous>, transform_indices = @transform_6, window_bounds = array<i64: 1, 128>}, {pipeline_mode = #tpu.pipeline_mode<synchronous>, transform_indices = @transform_7, window_bounds = array<i64: 5, 256, 256>}, {pipeline_mode = #tpu.pipeline_mode<synchronous>, transform_indices = @transform_8, window_bounds = array<i64: 1, 256>}, {pipeline_mode = #tpu.pipeline_mode<synchronous>, transform_indices = @transform_9, window_bounds = array<i64: 128, 64>}, {pipeline_mode = #tpu.pipeline_mode<synchronous>, transform_indices = @transform_10, window_bounds = array<i64: 1, 64>}, {pipeline_mode = #tpu.pipeline_mode<synchronous>, transform_indices = @transform_11, window_bounds = array<i64: 64, 256>}, {pipeline_mode = #tpu.pipeline_mode<synchronous>, transform_indices = @transform_12, window_bounds = array<i64: 1, 256>}, {pipeline_mode = #tpu.pipeline_mode<synchronous>, transform_indices = @transform_13, window_bounds = array<i64: 1, 128>}, {pipeline_mode = #tpu.pipeline_mode<synchronous>, transform_indices = @transform_14, window_bounds = array<i64: 1, 128>}, {transform_indices = @transform_15, window_bounds = array<i64: 2, 8, 256>}, {transform_indices = @transform_16, window_bounds = array<i64: 2, 8, 128>}, {transform_indices = @transform_17, window_bounds = array<i64: 2, 8, 128>}]} {
    %c0 = arith.constant 0 : index
    %c0_0 = arith.constant 0 : index
    %c0_1 = arith.constant 0 : index
    %0 = vector.load %arg1[%c0, %c0_0, %c0_1] : memref<2x8x128xbf16, #tpu.memory_space<vmem>>, vector<2x8x128xbf16>
    %1 = vector.shape_cast %0 : vector<2x8x128xbf16> to vector<16x128xbf16>
    %c0_2 = arith.constant 0 : index
    %c0_3 = arith.constant 0 : index
    %2 = vector.load %arg4[%c0_2, %c0_3] : memref<128x128xbf16, #tpu.memory_space<vmem>>, vector<128x128xbf16>
    %cst = arith.constant dense<0.000000e+00> : vector<16x128xf32>
    %3 = tpu.matmul %1, %2, %cst {dimension_numbers = #tpu.dot_dimension_numbers<[1], [0], [0], [1], [0, 0, 1, 1], [], []>} : vector<16x128xbf16>, vector<128x128xbf16>, vector<16x128xf32> -> vector<16x128xf32>
    %c0_4 = arith.constant 0 : index
    %c0_5 = arith.constant 0 : index
    %4 = vector.load %arg5[%c0_4, %c0_5] : memref<1x128xf32, #tpu.memory_space<vmem>>, vector<1x128xf32>
    %5 = vector.shape_cast %4 : vector<1x128xf32> to vector<128xf32>
    %6 = vector.shape_cast %5 : vector<128xf32> to vector<1x128xf32>
    %7 = vector.broadcast %6 : vector<1x128xf32> to vector<16x128xf32>
    %8 = arith.addf %3, %7 : vector<16x128xf32>
    %c0_6 = arith.constant 0 : index
    %c0_7 = arith.constant 0 : index
    %c0_8 = arith.constant 0 : index
    %9 = vector.load %arg3[%c0_6, %c0_7, %c0_8] : memref<2x1x128xf32, #tpu.memory_space<vmem>>, vector<2x1x128xf32>
    %10 = vector.shape_cast %9 : vector<2x1x128xf32> to vector<2x1x128xf32>
    %11 = vector.broadcast %10 : vector<2x1x128xf32> to vector<2x8x128xf32>
    %12 = vector.shape_cast %11 : vector<2x8x128xf32> to vector<16x128xf32>
    %13 = tpu.concatenate %8, %12 in 1 : vector<16x128xf32>, vector<16x128xf32> -> vector<16x256xf32>
    %14 = arith.truncf %13 : vector<16x256xf32> to vector<16x256xbf16>
    %c0_9 = arith.constant 0 : index
    %c0_10 = arith.constant 0 : index
    %15 = vector.load %arg6[%c0_9, %c0_10] : memref<256x128xbf16, #tpu.memory_space<vmem>>, vector<256x128xbf16>
    %cst_11 = arith.constant dense<0.000000e+00> : vector<16x128xf32>
    %16 = tpu.matmul %14, %15, %cst_11 {dimension_numbers = #tpu.dot_dimension_numbers<[1], [0], [0], [1], [0, 0, 1, 1], [], []>} : vector<16x256xbf16>, vector<256x128xbf16>, vector<16x128xf32> -> vector<16x128xf32>
    %c0_12 = arith.constant 0 : index
    %c0_13 = arith.constant 0 : index
    %17 = vector.load %arg7[%c0_12, %c0_13] : memref<1x128xf32, #tpu.memory_space<vmem>>, vector<1x128xf32>
    %18 = vector.shape_cast %17 : vector<1x128xf32> to vector<128xf32>
    %19 = vector.shape_cast %18 : vector<128xf32> to vector<1x128xf32>
    %20 = vector.broadcast %19 : vector<1x128xf32> to vector<16x128xf32>
    %21 = arith.addf %16, %20 : vector<16x128xf32>
    %cst_14 = arith.constant 0.000000e+00 : bf16
    %22 = vector.broadcast %cst_14 : bf16 to vector<2x4x256xbf16>
    %23 = vector.shape_cast %14 : vector<16x256xbf16> to vector<2x8x256xbf16>
    %24 = tpu.concatenate %22, %23 in 1 : vector<2x4x256xbf16>, vector<2x8x256xbf16> -> vector<2x12x256xbf16>
    %cst_15 = arith.constant 0.000000e+00 : f32
    %25 = vector.broadcast %cst_15 : f32 to vector<16x256xf32>
    %26 = vector.extract_strided_slice %24 {offsets = [0, 0, 0], sizes = [2, 8, 256], strides = [1, 1, 1]} : vector<2x12x256xbf16> to vector<2x8x256xbf16>
    %27 = vector.shape_cast %26 : vector<2x8x256xbf16> to vector<16x256xbf16>
    %c0_16 = arith.constant 0 : index
    %c0_17 = arith.constant 0 : index
    %c0_18 = arith.constant 0 : index
    %28 = vector.load %arg8[%c0_16, %c0_17, %c0_18] : memref<5x256x256xbf16, #tpu.memory_space<vmem>>, vector<1x256x256xbf16>
    %29 = vector.shape_cast %28 : vector<1x256x256xbf16> to vector<256x256xbf16>
    %cst_19 = arith.constant dense<0.000000e+00> : vector<16x256xf32>
    %30 = tpu.matmul %27, %29, %cst_19 {dimension_numbers = #tpu.dot_dimension_numbers<[1], [0], [0], [1], [0, 0, 1, 1], [], []>} : vector<16x256xbf16>, vector<256x256xbf16>, vector<16x256xf32> -> vector<16x256xf32>
    %31 = arith.addf %25, %30 : vector<16x256xf32>
    %32 = vector.extract_strided_slice %24 {offsets = [0, 1, 0], sizes = [2, 8, 256], strides = [1, 1, 1]} : vector<2x12x256xbf16> to vector<2x8x256xbf16>
    %33 = vector.shape_cast %32 : vector<2x8x256xbf16> to vector<16x256xbf16>
    %c1 = arith.constant 1 : index
    %c0_20 = arith.constant 0 : index
    %c0_21 = arith.constant 0 : index
    %34 = vector.load %arg8[%c1, %c0_20, %c0_21] : memref<5x256x256xbf16, #tpu.memory_space<vmem>>, vector<1x256x256xbf16>
    %35 = vector.shape_cast %34 : vector<1x256x256xbf16> to vector<256x256xbf16>
    %cst_22 = arith.constant dense<0.000000e+00> : vector<16x256xf32>
    %36 = tpu.matmul %33, %35, %cst_22 {dimension_numbers = #tpu.dot_dimension_numbers<[1], [0], [0], [1], [0, 0, 1, 1], [], []>} : vector<16x256xbf16>, vector<256x256xbf16>, vector<16x256xf32> -> vector<16x256xf32>
    %37 = arith.addf %31, %36 : vector<16x256xf32>
    %38 = vector.extract_strided_slice %24 {offsets = [0, 2, 0], sizes = [2, 8, 256], strides = [1, 1, 1]} : vector<2x12x256xbf16> to vector<2x8x256xbf16>
    %39 = vector.shape_cast %38 : vector<2x8x256xbf16> to vector<16x256xbf16>
    %c2 = arith.constant 2 : index
    %c0_23 = arith.constant 0 : index
    %c0_24 = arith.constant 0 : index
    %40 = vector.load %arg8[%c2, %c0_23, %c0_24] : memref<5x256x256xbf16, #tpu.memory_space<vmem>>, vector<1x256x256xbf16>
    %41 = vector.shape_cast %40 : vector<1x256x256xbf16> to vector<256x256xbf16>
    %cst_25 = arith.constant dense<0.000000e+00> : vector<16x256xf32>
    %42 = tpu.matmul %39, %41, %cst_25 {dimension_numbers = #tpu.dot_dimension_numbers<[1], [0], [0], [1], [0, 0, 1, 1], [], []>} : vector<16x256xbf16>, vector<256x256xbf16>, vector<16x256xf32> -> vector<16x256xf32>
    %43 = arith.addf %37, %42 : vector<16x256xf32>
    %44 = vector.extract_strided_slice %24 {offsets = [0, 3, 0], sizes = [2, 8, 256], strides = [1, 1, 1]} : vector<2x12x256xbf16> to vector<2x8x256xbf16>
    %45 = vector.shape_cast %44 : vector<2x8x256xbf16> to vector<16x256xbf16>
    %c3 = arith.constant 3 : index
    %c0_26 = arith.constant 0 : index
    %c0_27 = arith.constant 0 : index
    %46 = vector.load %arg8[%c3, %c0_26, %c0_27] : memref<5x256x256xbf16, #tpu.memory_space<vmem>>, vector<1x256x256xbf16>
    %47 = vector.shape_cast %46 : vector<1x256x256xbf16> to vector<256x256xbf16>
    %cst_28 = arith.constant dense<0.000000e+00> : vector<16x256xf32>
    %48 = tpu.matmul %45, %47, %cst_28 {dimension_numbers = #tpu.dot_dimension_numbers<[1], [0], [0], [1], [0, 0, 1, 1], [], []>} : vector<16x256xbf16>, vector<256x256xbf16>, vector<16x256xf32> -> vector<16x256xf32>
    %49 = arith.addf %43, %48 : vector<16x256xf32>
    %50 = vector.extract_strided_slice %24 {offsets = [0, 4, 0], sizes = [2, 8, 256], strides = [1, 1, 1]} : vector<2x12x256xbf16> to vector<2x8x256xbf16>
    %51 = vector.shape_cast %50 : vector<2x8x256xbf16> to vector<16x256xbf16>
    %c4 = arith.constant 4 : index
    %c0_29 = arith.constant 0 : index
    %c0_30 = arith.constant 0 : index
    %52 = vector.load %arg8[%c4, %c0_29, %c0_30] : memref<5x256x256xbf16, #tpu.memory_space<vmem>>, vector<1x256x256xbf16>
    %53 = vector.shape_cast %52 : vector<1x256x256xbf16> to vector<256x256xbf16>
    %cst_31 = arith.constant dense<0.000000e+00> : vector<16x256xf32>
    %54 = tpu.matmul %51, %53, %cst_31 {dimension_numbers = #tpu.dot_dimension_numbers<[1], [0], [0], [1], [0, 0, 1, 1], [], []>} : vector<16x256xbf16>, vector<256x256xbf16>, vector<16x256xf32> -> vector<16x256xf32>
    %55 = arith.addf %49, %54 : vector<16x256xf32>
    %c0_32 = arith.constant 0 : index
    %c0_33 = arith.constant 0 : index
    %56 = vector.load %arg9[%c0_32, %c0_33] : memref<1x256xf32, #tpu.memory_space<vmem>>, vector<1x256xf32>
    %57 = vector.shape_cast %56 : vector<1x256xf32> to vector<256xf32>
    %58 = vector.shape_cast %57 : vector<256xf32> to vector<1x256xf32>
    %59 = vector.broadcast %58 : vector<1x256xf32> to vector<16x256xf32>
    %60 = arith.addf %55, %59 : vector<16x256xf32>
    %61 = vector.extract_strided_slice %60 {offsets = [0, 0], sizes = [16, 128], strides = [1, 1]} : vector<16x256xf32> to vector<16x128xf32>
    %62 = vector.extract_strided_slice %60 {offsets = [0, 128], sizes = [16, 128], strides = [1, 1]} : vector<16x256xf32> to vector<16x128xf32>
    %63 = arith.negf %62 : vector<16x128xf32>
    %64 = math.exp %63 : vector<16x128xf32>
    %cst_34 = arith.constant 1.000000e+00 : f32
    %65 = vector.broadcast %cst_34 : f32 to vector<16x128xf32>
    %66 = arith.addf %65, %64 : vector<16x128xf32>
    %67 = arith.divf %65, %66 : vector<16x128xf32>
    %68 = arith.mulf %61, %67 : vector<16x128xf32>
    %69 = arith.addf %68, %8 : vector<16x128xf32>
    %cst_35 = arith.constant 0.707106769 : f32
    %70 = vector.broadcast %cst_35 : f32 to vector<16x128xf32>
    %71 = arith.mulf %69, %70 : vector<16x128xf32>
    %72 = vector.shape_cast %71 : vector<16x128xf32> to vector<2x8x128xf32>
    %73 = arith.truncf %72 : vector<2x8x128xf32> to vector<2x8x128xbf16>
    %c0_36 = arith.constant 0 : index
    %c0_37 = arith.constant 0 : index
    %c0_38 = arith.constant 0 : index
    %74 = vector.load %arg2[%c0_36, %c0_37, %c0_38] : memref<2x128x128xbf16, #tpu.memory_space<vmem>>, vector<2x128x128xbf16>
    "tpu.trace_start"() <{level = 10 : i32, message = "btf,bfs->bts"}> : () -> ()
    %cst_39 = arith.constant dense<0.000000e+00> : vector<2x8x128xf32>
    %75 = tpu.matmul %73, %74, %cst_39 {dimension_numbers = #tpu.dot_dimension_numbers<[2], [1], [1], [2], [0, 0, 0, 1, 1, 2], [0], [0]>} : vector<2x8x128xbf16>, vector<2x128x128xbf16>, vector<2x8x128xf32> -> vector<2x8x128xf32>
    "tpu.trace_stop"() : () -> ()
    %76 = tpu.iota {dimensions = array<i32: 2>} : vector<1x1x128xi32>
    %c16_i32 = arith.constant 16 : i32
    %77 = vector.broadcast %c16_i32 : i32 to vector<1x1x128xi32>
    %78 = arith.cmpi slt, %76, %77 : vector<1x1x128xi32>
    %cst_40 = arith.constant -1.000000e+30 : f32
    %79 = vector.shape_cast %78 : vector<1x1x128xi1> to vector<1x1x128xi1>
    %80 = vector.broadcast %79 : vector<1x1x128xi1> to vector<2x8x128xi1>
    %81 = vector.broadcast %cst_40 : f32 to vector<2x8x128xf32>
    %82 = arith.select %80, %75, %81 : vector<2x8x128xi1>, vector<2x8x128xf32>
    %cst_41 = arith.constant dense<0xFF800000> : vector<2x8xf32>
    %83 = vector.multi_reduction <maximumf>, %82, %cst_41 [2] : vector<2x8x128xf32> to vector<2x8xf32>
    %84 = vector.shape_cast %83 : vector<2x8xf32> to vector<2x8x1xf32>
    %85 = vector.broadcast %84 : vector<2x8x1xf32> to vector<2x8x128xf32>
    %86 = arith.subf %82, %85 : vector<2x8x128xf32>
    %87 = math.exp %86 : vector<2x8x128xf32>
    %cst_42 = arith.constant dense<0.000000e+00> : vector<2x8xf32>
    %88 = vector.multi_reduction <add>, %87, %cst_42 [2] : vector<2x8x128xf32> to vector<2x8xf32>
    %89 = vector.shape_cast %88 : vector<2x8xf32> to vector<2x8x1xf32>
    %90 = vector.broadcast %89 : vector<2x8x1xf32> to vector<2x8x128xf32>
    %91 = arith.divf %87, %90 : vector<2x8x128xf32>
    %c0_43 = arith.constant 0 : index
    %c0_44 = arith.constant 0 : index
    %c0_45 = arith.constant 0 : index
    %92 = vector.load %arg18[%c0_43, %c0_44, %c0_45] : memref<2x8x128xf32, #tpu.memory_space<vmem>>, vector<2x8x128xf32>
    tpu.vector_store %arg18[%c0_43, %c0_44, %c0_45], %91 {strides = array<i32>} : memref<2x8x128xf32, #tpu.memory_space<vmem>>, vector<2x8x128xf32>,
    %93 = arith.truncf %91 : vector<2x8x128xf32> to vector<2x8x128xbf16>
    "tpu.trace_start"() <{level = 10 : i32, message = "bts,bfs->btf"}> : () -> ()
    %cst_46 = arith.constant dense<0.000000e+00> : vector<2x8x128xf32>
    %94 = tpu.matmul %93, %74, %cst_46 {dimension_numbers = #tpu.dot_dimension_numbers<[2], [2], [1], [1], [0, 0, 0, 1, 1, 1], [0], [0]>} : vector<2x8x128xbf16>, vector<2x128x128xbf16>, vector<2x8x128xf32> -> vector<2x8x128xf32>
    "tpu.trace_stop"() : () -> ()
    %cst_47 = arith.constant 4.000000e+00 : f32
    %95 = vector.broadcast %cst_47 : f32 to vector<2x8x128xf32>
    %96 = arith.mulf %94, %95 : vector<2x8x128xf32>
    %97 = vector.shape_cast %96 : vector<2x8x128xf32> to vector<16x128xf32>
    %98 = arith.addf %97, %68 : vector<16x128xf32>
    %cst_48 = arith.constant 0.707106769 : f32
    %99 = vector.broadcast %cst_48 : f32 to vector<16x128xf32>
    %100 = arith.mulf %98, %99 : vector<16x128xf32>
    %101 = arith.addf %100, %21 : vector<16x128xf32>
    %cst_49 = arith.constant 0.707106769 : f32
    %102 = vector.broadcast %cst_49 : f32 to vector<16x128xf32>
    %103 = arith.mulf %101, %102 : vector<16x128xf32>
    %104 = arith.addf %103, %12 : vector<16x128xf32>
    %c0_50 = arith.constant 0 : index
    %c0_51 = arith.constant 0 : index
    %105 = vector.load %arg14[%c0_50, %c0_51] : memref<1x128xf32, #tpu.memory_space<vmem>>, vector<1x128xf32>
    %106 = vector.shape_cast %105 : vector<1x128xf32> to vector<128xf32>
    %107 = vector.shape_cast %106 : vector<128xf32> to vector<1x128xf32>
    %108 = vector.broadcast %107 : vector<1x128xf32> to vector<16x128xf32>
    %109 = arith.mulf %104, %108 : vector<16x128xf32>
    %c0_52 = arith.constant 0 : index
    %c0_53 = arith.constant 0 : index
    %110 = vector.load %arg15[%c0_52, %c0_53] : memref<1x128xf32, #tpu.memory_space<vmem>>, vector<1x128xf32>
    %111 = vector.shape_cast %110 : vector<1x128xf32> to vector<128xf32>
    %112 = vector.shape_cast %111 : vector<128xf32> to vector<1x128xf32>
    %113 = vector.broadcast %112 : vector<1x128xf32> to vector<16x128xf32>
    %114 = arith.addf %109, %113 : vector<16x128xf32>
    %115 = vector.shape_cast %114 : vector<16x128xf32> to vector<2x8x128xf32>
    %c0_54 = arith.constant 0 : index
    %c0_55 = arith.constant 0 : index
    %c0_56 = arith.constant 0 : index
    %116 = vector.load %arg17[%c0_54, %c0_55, %c0_56] : memref<2x8x128xf32, #tpu.memory_space<vmem>>, vector<2x8x128xf32>
    tpu.vector_store %arg17[%c0_54, %c0_55, %c0_56], %115 {strides = array<i32>} : memref<2x8x128xf32, #tpu.memory_space<vmem>>, vector<2x8x128xf32>,
    %117 = arith.truncf %103 : vector<16x128xf32> to vector<16x128xbf16>
    %c0_57 = arith.constant 0 : index
    %c0_58 = arith.constant 0 : index
    %118 = vector.load %arg10[%c0_57, %c0_58] : memref<128x64xbf16, #tpu.memory_space<vmem>>, vector<128x64xbf16>
    %cst_59 = arith.constant dense<0.000000e+00> : vector<16x64xf32>
    %119 = tpu.matmul %117, %118, %cst_59 {dimension_numbers = #tpu.dot_dimension_numbers<[1], [0], [0], [1], [0, 0, 1, 1], [], []>} : vector<16x128xbf16>, vector<128x64xbf16>, vector<16x64xf32> -> vector<16x64xf32>
    %c0_60 = arith.constant 0 : index
    %c0_61 = arith.constant 0 : index
    %120 = vector.load %arg11[%c0_60, %c0_61] : memref<1x64xf32, #tpu.memory_space<vmem>>, vector<1x64xf32>
    %121 = vector.shape_cast %120 : vector<1x64xf32> to vector<64xf32>
    %122 = vector.shape_cast %121 : vector<64xf32> to vector<1x64xf32>
    %123 = vector.broadcast %122 : vector<1x64xf32> to vector<16x64xf32>
    %124 = arith.addf %119, %123 : vector<16x64xf32>
    %125 = arith.truncf %124 : vector<16x64xf32> to vector<16x64xbf16>
    %c0_62 = arith.constant 0 : index
    %c0_63 = arith.constant 0 : index
    %126 = vector.load %arg12[%c0_62, %c0_63] : memref<64x256xbf16, #tpu.memory_space<vmem>>, vector<64x256xbf16>
    %cst_64 = arith.constant dense<0.000000e+00> : vector<16x256xf32>
    %127 = tpu.matmul %125, %126, %cst_64 {dimension_numbers = #tpu.dot_dimension_numbers<[1], [0], [0], [1], [0, 0, 1, 1], [], []>} : vector<16x64xbf16>, vector<64x256xbf16>, vector<16x256xf32> -> vector<16x256xf32>
    %c0_65 = arith.constant 0 : index
    %c0_66 = arith.constant 0 : index
    %128 = vector.load %arg13[%c0_65, %c0_66] : memref<1x256xf32, #tpu.memory_space<vmem>>, vector<1x256xf32>
    %129 = vector.shape_cast %128 : vector<1x256xf32> to vector<256xf32>
    %130 = vector.shape_cast %129 : vector<256xf32> to vector<1x256xf32>
    %131 = vector.broadcast %130 : vector<1x256xf32> to vector<16x256xf32>
    %132 = arith.addf %127, %131 : vector<16x256xf32>
    %133 = vector.shape_cast %132 : vector<16x256xf32> to vector<2x8x256xf32>
    %c0_67 = arith.constant 0 : index
    %c0_68 = arith.constant 0 : index
    %c0_69 = arith.constant 0 : index
    %134 = vector.load %arg16[%c0_67, %c0_68, %c0_69] : memref<2x8x256xf32, #tpu.memory_space<vmem>>, vector<2x8x256xf32>
    tpu.vector_store %arg16[%c0_67, %c0_68, %c0_69], %133 {strides = array<i32>} : memref<2x8x256xf32, #tpu.memory_space<vmem>>, vector<2x8x256xf32>,
    return
  }
  func.func @transform_0(%arg0: i32) -> (i32, i32, i32) {
    %c0_i32 = arith.constant 0 : i32
    %c0_i32_0 = arith.constant 0 : i32
    %c0_i32_1 = arith.constant 0 : i32
    return %arg0, %c0_i32, %c0_i32_0 : i32, i32, i32
  }
  func.func @transform_1(%arg0: i32) -> (i32, i32, i32) {
    %c0_i32 = arith.constant 0 : i32
    %c0_i32_0 = arith.constant 0 : i32
    %c0_i32_1 = arith.constant 0 : i32
    return %arg0, %c0_i32, %c0_i32_0 : i32, i32, i32
  }
  func.func @transform_2(%arg0: i32) -> (i32, i32, i32) {
    %c0_i32 = arith.constant 0 : i32
    %c0_i32_0 = arith.constant 0 : i32
    %c0_i32_1 = arith.constant 0 : i32
    return %arg0, %c0_i32, %c0_i32_0 : i32, i32, i32
  }
  func.func @transform_3(%arg0: i32) -> (i32, i32) {
    %c0_i32 = arith.constant 0 : i32
    %c0_i32_0 = arith.constant 0 : i32
    %c0_i32_1 = arith.constant 0 : i32
    return %c0_i32, %c0_i32_0 : i32, i32
  }
  func.func @transform_4(%arg0: i32) -> (i32, i32) {
    %c0_i32 = arith.constant 0 : i32
    %c0_i32_0 = arith.constant 0 : i32
    %c0_i32_1 = arith.constant 0 : i32
    return %c0_i32, %c0_i32_0 : i32, i32
  }
  func.func @transform_5(%arg0: i32) -> (i32, i32) {
    %c0_i32 = arith.constant 0 : i32
    %c0_i32_0 = arith.constant 0 : i32
    %c0_i32_1 = arith.constant 0 : i32
    return %c0_i32, %c0_i32_0 : i32, i32
  }
  func.func @transform_6(%arg0: i32) -> (i32, i32) {
    %c0_i32 = arith.constant 0 : i32
    %c0_i32_0 = arith.constant 0 : i32
    %c0_i32_1 = arith.constant 0 : i32
    return %c0_i32, %c0_i32_0 : i32, i32
  }
  func.func @transform_7(%arg0: i32) -> (i32, i32, i32) {
    %c0_i32 = arith.constant 0 : i32
    %c0_i32_0 = arith.constant 0 : i32
    %c0_i32_1 = arith.constant 0 : i32
    %c0_i32_2 = arith.constant 0 : i32
    return %c0_i32, %c0_i32_0, %c0_i32_1 : i32, i32, i32
  }
  func.func @transform_8(%arg0: i32) -> (i32, i32) {
    %c0_i32 = arith.constant 0 : i32
    %c0_i32_0 = arith.constant 0 : i32
    %c0_i32_1 = arith.constant 0 : i32
    return %c0_i32, %c0_i32_0 : i32, i32
  }
  func.func @transform_9(%arg0: i32) -> (i32, i32) {
    %c0_i32 = arith.constant 0 : i32
    %c0_i32_0 = arith.constant 0 : i32
    %c0_i32_1 = arith.constant 0 : i32
    return %c0_i32, %c0_i32_0 : i32, i32
  }
  func.func @transform_10(%arg0: i32) -> (i32, i32) {
    %c0_i32 = arith.constant 0 : i32
    %c0_i32_0 = arith.constant 0 : i32
    %c0_i32_1 = arith.constant 0 : i32
    return %c0_i32, %c0_i32_0 : i32, i32
  }
  func.func @transform_11(%arg0: i32) -> (i32, i32) {
    %c0_i32 = arith.constant 0 : i32
    %c0_i32_0 = arith.constant 0 : i32
    %c0_i32_1 = arith.constant 0 : i32
    return %c0_i32, %c0_i32_0 : i32, i32
  }
  func.func @transform_12(%arg0: i32) -> (i32, i32) {
    %c0_i32 = arith.constant 0 : i32
    %c0_i32_0 = arith.constant 0 : i32
    %c0_i32_1 = arith.constant 0 : i32
    return %c0_i32, %c0_i32_0 : i32, i32
  }
  func.func @transform_13(%arg0: i32) -> (i32, i32) {
    %c0_i32 = arith.constant 0 : i32
    %c0_i32_0 = arith.constant 0 : i32
    %c0_i32_1 = arith.constant 0 : i32
    return %c0_i32, %c0_i32_0 : i32, i32
  }
  func.func @transform_14(%arg0: i32) -> (i32, i32) {
    %c0_i32 = arith.constant 0 : i32
    %c0_i32_0 = arith.constant 0 : i32
    %c0_i32_1 = arith.constant 0 : i32
    return %c0_i32, %c0_i32_0 : i32, i32
  }
  func.func @transform_15(%arg0: i32) -> (i32, i32, i32) {
    %c0_i32 = arith.constant 0 : i32
    %c0_i32_0 = arith.constant 0 : i32
    %c0_i32_1 = arith.constant 0 : i32
    return %arg0, %c0_i32, %c0_i32_0 : i32, i32, i32
  }
  func.func @transform_16(%arg0: i32) -> (i32, i32, i32) {
    %c0_i32 = arith.constant 0 : i32
    %c0_i32_0 = arith.constant 0 : i32
    %c0_i32_1 = arith.constant 0 : i32
    return %arg0, %c0_i32, %c0_i32_0 : i32, i32, i32
  }
  func.func @transform_17(%arg0: i32) -> (i32, i32, i32) {
    %c0_i32 = arith.constant 0 : i32
    %c0_i32_0 = arith.constant 0 : i32
    %c0_i32_1 = arith.constant 0 : i32
    return %arg0, %c0_i32, %c0_i32_0 : i32, i32, i32
  }
}

</mosaic_0001>

<llo_original>
// kernel: tpu_custom_call.1
$region0: #{tpu_custom_call.1}
  #allocation0 [shape = 'u32[]', space=smem, size = 0x4, offset = 0x4, fixed_abs, tag = 'smem constant byte address 0x4 - core index']
  #allocation1 [shape = 'u32[144,128]{1,0:T(1,128)}', space=vmem, size = 0x12000, scoped, tag = 'internal scratch']
  %s0 = inlined_call_operand.vmem [shape: bf16[2,8,128], index: 0, kind: input, shape index: {}]
  %s1 = inlined_call_operand.hbm [shape: bf16[2,128,128], index: 1, kind: input, shape index: {}]
  %s2 = inlined_call_operand.vmem [shape: f32[2,1,128], index: 2, kind: input, shape index: {}]
  %s3 = inlined_call_operand.vmem [shape: bf16[128,128], index: 3, kind: input, shape index: {}]
  %s4 = inlined_call_operand.vmem [shape: f32[1,128], index: 4, kind: input, shape index: {}]
  %s5 = inlined_call_operand.hbm [shape: bf16[256,128], index: 5, kind: input, shape index: {}]
  %s6 = inlined_call_operand.vmem [shape: f32[1,128], index: 6, kind: input, shape index: {}]
  %s7 = inlined_call_operand.hbm [shape: bf16[5,256,256], index: 7, kind: input, shape index: {}]
  %s8 = inlined_call_operand.vmem [shape: f32[1,256], index: 8, kind: input, shape index: {}]
  %s9 = inlined_call_operand.vmem [shape: bf16[128,64], index: 9, kind: input, shape index: {}]
  %s10 = inlined_call_operand.vmem [shape: f32[1,64], index: 10, kind: input, shape index: {}]
  %s11 = inlined_call_operand.hbm [shape: bf16[64,256], index: 11, kind: input, shape index: {}]
  %s12 = inlined_call_operand.vmem [shape: f32[1,256], index: 12, kind: input, shape index: {}]
  %s13 = inlined_call_operand.vmem [shape: f32[1,128], index: 13, kind: input, shape index: {}]
  %s14 = inlined_call_operand.vmem [shape: f32[1,128], index: 14, kind: input, shape index: {}]
  %s15 = inlined_call_operand.hbm [shape: f32[2,8,256], index: 15, kind: output, shape index: {0}]
  %s16 = inlined_call_operand.hbm [shape: f32[2,8,128], index: 16, kind: output, shape index: {1}]
  %s17 = inlined_call_operand.hbm [shape: f32[2,8,128], index: 17, kind: output, shape index: {2}]
  %18 = xla_tuple %s15, %s16, %s17
  %s19 = sld [smem:[#allocation0]]
  $region102: #{tpu_custom_call.1} parent=0
    _
  %s21 = ssub.s32 1, %s19
  %s22 = scalar_select 0, %s21, %s19
  $region1: #{tpu_custom_call.1} parent=0
    #allocation2 [shape = 'u8[65536]{0}', space=vmem, size = 0x10000, scoped, tag = 'input window, operand 1, single buffered']
    #allocation3 [shape = 's32[1]{0}', space=sflag, size = 0x4, scoped, tag = 'scoped memory for tpu_custom_call.1']
    #allocation4 [shape = 's32[1]{0}', space=sflag, size = 0x4, scoped, tag = 'scoped memory for tpu_custom_call.1']
    #allocation5 [shape = 'u8[65536]{0}', space=vmem, size = 0x10000, scoped, tag = 'input window, operand 5, single buffered']
    #allocation6 [shape = 's32[1]{0}', space=sflag, size = 0x4, scoped, tag = 'scoped memory for tpu_custom_call.1']
    #allocation7 [shape = 'u8[655360]{0}', space=vmem, size = 0xa0000, scoped, tag = 'input window, operand 7, single buffered']
    #allocation8 [shape = 'u8[32768]{0}', space=vmem, size = 0x8000, scoped, tag = 'input window, operand 11, single buffered']
    #allocation9 [shape = 's32[1]{0}', space=sflag, size = 0x4, scoped, tag = 'scoped memory for tpu_custom_call.1']
    #allocation10 [shape = 'u8[16384]{0}', space=vmem, size = 0x4000, scoped, tag = 'output window, operand 0, single buffered']
    #allocation11 [shape = 'u8[8192]{0}', space=vmem, size = 0x2000, scoped, tag = 'output window, operand 1, single buffered']
    #allocation12 [shape = 's32[1]{0}', space=sflag, size = 0x4, scoped, tag = 'scoped memory for tpu_custom_call.1']
    #allocation13 [shape = 'u8[8192]{0}', space=vmem, size = 0x2000, scoped, tag = 'output window, operand 2, single buffered']
    %23 = vsyncpa [#allocation3], 0
    %24 = vsyncpa [#allocation6], 0
    %25 = vsyncpa [#allocation9], 0
    %26 = vsyncpa [#allocation4], 0
    %27 = vsyncpa [#allocation12], 0
    // Predicated region
    $region2: #{tpu_custom_call.1} parent=1 // pred_check
      _
    $region3: #{tpu_custom_call.1} parent=1 // pred_check_branch
      %29 = sbr.rel (0) target = $region5
    $region4: #{tpu_custom_call.1} parent=1 // pred_region
      _
    $region5: #{tpu_custom_call.1} parent=1 // pred_fallthru
      _
    // Predicated region
    $region6: #{tpu_custom_call.1} parent=1 // pred_check
      _
    $region7: #{tpu_custom_call.1} parent=1 // pred_check_branch
      %31 = sbr.rel (0) target = $region9
    $region8: #{tpu_custom_call.1} parent=1 // pred_region
      %s33 = ssub.s32 2048, 2048
      %34 = vsyncadd [#allocation3], %s33
      %s35 = sshll.u32 [#allocation2], 4
      %s36 = int_to_ptr.vmem [resolvable:$true] %s35
      %41 = dma.hbm_to_vmem [thread:$0]  %s1, 2048, %s36, [#allocation3], 64, 64, 4
    $region9: #{tpu_custom_call.1} parent=1 // pred_fallthru
      _
    // Predicated region
    $region10: #{tpu_custom_call.1} parent=1 // pred_check
      _
    $region11: #{tpu_custom_call.1} parent=1 // pred_check_branch
      %43 = sbr.rel (0) target = $region13
    $region12: #{tpu_custom_call.1} parent=1 // pred_region
      _
    $region13: #{tpu_custom_call.1} parent=1 // pred_fallthru
      _
    // Predicated region
    $region14: #{tpu_custom_call.1} parent=1 // pred_check
      _
    $region15: #{tpu_custom_call.1} parent=1 // pred_check_branch
      %45 = sbr.rel (0) target = $region17
    $region16: #{tpu_custom_call.1} parent=1 // pred_region
      _
    $region17: #{tpu_custom_call.1} parent=1 // pred_fallthru
      _
    // Predicated region
    $region18: #{tpu_custom_call.1} parent=1 // pred_check
      _
    $region19: #{tpu_custom_call.1} parent=1 // pred_check_branch
      %47 = sbr.rel (0) target = $region21
    $region20: #{tpu_custom_call.1} parent=1 // pred_region
      _
    $region21: #{tpu_custom_call.1} parent=1 // pred_fallthru
      _
    // Predicated region
    $region22: #{tpu_custom_call.1} parent=1 // pred_check
      _
    $region23: #{tpu_custom_call.1} parent=1 // pred_check_branch
      %49 = sbr.rel (0) target = $region25
    $region24: #{tpu_custom_call.1} parent=1 // pred_region
      %s51 = ssub.s32 2048, 2048
      %52 = vsyncadd [#allocation6], %s51
      %s53 = sshll.u32 [#allocation5], 4
      %s54 = int_to_ptr.vmem [resolvable:$true] %s53
      %59 = dma.hbm_to_vmem [thread:$0]  %s5, 2048, %s54, [#allocation6], 64, 64, 4
    $region25: #{tpu_custom_call.1} parent=1 // pred_fallthru
      _
    // Predicated region
    $region26: #{tpu_custom_call.1} parent=1 // pred_check
      _
    $region27: #{tpu_custom_call.1} parent=1 // pred_check_branch
      %61 = sbr.rel (0) target = $region29
    $region28: #{tpu_custom_call.1} parent=1 // pred_region
      _
    $region29: #{tpu_custom_call.1} parent=1 // pred_fallthru
      _
    // Predicated region
    $region30: #{tpu_custom_call.1} parent=1 // pred_check
      _
    $region31: #{tpu_custom_call.1} parent=1 // pred_check_branch
      %63 = sbr.rel (0) target = $region33
    $region32: #{tpu_custom_call.1} parent=1 // pred_region
      %s65 = ssub.s32 20480, 20480
      %66 = vsyncadd [#allocation6], %s65
      %s67 = sshll.u32 [#allocation7], 4
      %s68 = int_to_ptr.vmem [resolvable:$true] %s67
      %73 = dma.hbm_to_vmem [thread:$0]  %s7, 20480, %s68, [#allocation6], 128, 128, 8
    $region33: #{tpu_custom_call.1} parent=1 // pred_fallthru
      _
    // Predicated region
    $region34: #{tpu_custom_call.1} parent=1 // pred_check
      _
    $region35: #{tpu_custom_call.1} parent=1 // pred_check_branch
      %75 = sbr.rel (0) target = $region37
    $region36: #{tpu_custom_call.1} parent=1 // pred_region
      _
    $region37: #{tpu_custom_call.1} parent=1 // pred_fallthru
      _
    // Predicated region
    $region38: #{tpu_custom_call.1} parent=1 // pred_check
      _
    $region39: #{tpu_custom_call.1} parent=1 // pred_check_branch
      %77 = sbr.rel (0) target = $region41
    $region40: #{tpu_custom_call.1} parent=1 // pred_region
      _
    $region41: #{tpu_custom_call.1} parent=1 // pred_fallthru
      _
    // Predicated region
    $region42: #{tpu_custom_call.1} parent=1 // pred_check
      _
    $region43: #{tpu_custom_call.1} parent=1 // pred_check_branch
      %79 = sbr.rel (0) target = $region45
    $region44: #{tpu_custom_call.1} parent=1 // pred_region
      _
    $region45: #{tpu_custom_call.1} parent=1 // pred_fallthru
      _
    // Predicated region
    $region46: #{tpu_custom_call.1} parent=1 // pred_check
      _
    $region47: #{tpu_custom_call.1} parent=1 // pred_check_branch
      %81 = sbr.rel (0) target = $region49
    $region48: #{tpu_custom_call.1} parent=1 // pred_region
      %s83 = ssub.s32 1024, 1024
      %84 = vsyncadd [#allocation9], %s83
      %s85 = sshll.u32 [#allocation8], 4
      %s86 = int_to_ptr.vmem [resolvable:$true] %s85
      %91 = dma.hbm_to_vmem [thread:$0]  %s11, 1024, %s86, [#allocation9], 128, 128, 8
    $region49: #{tpu_custom_call.1} parent=1 // pred_fallthru
      _
    // Predicated region
    $region50: #{tpu_custom_call.1} parent=1 // pred_check
      _
    $region51: #{tpu_custom_call.1} parent=1 // pred_check_branch
      %93 = sbr.rel (0) target = $region53
    $region52: #{tpu_custom_call.1} parent=1 // pred_region
      _
    $region53: #{tpu_custom_call.1} parent=1 // pred_fallthru
      _
    // Predicated region
    $region54: #{tpu_custom_call.1} parent=1 // pred_check
      _
    $region55: #{tpu_custom_call.1} parent=1 // pred_check_branch
      %95 = sbr.rel (0) target = $region57
    $region56: #{tpu_custom_call.1} parent=1 // pred_region
      _
    $region57: #{tpu_custom_call.1} parent=1 // pred_fallthru
      _
    // Predicated region
    $region58: #{tpu_custom_call.1} parent=1 // pred_check
      _
    $region59: #{tpu_custom_call.1} parent=1 // pred_check_branch
      %97 = sbr.rel (0) target = $region61
    $region60: #{tpu_custom_call.1} parent=1 // pred_region
      _
    $region61: #{tpu_custom_call.1} parent=1 // pred_fallthru
      _
    // Predicated region
    $region62: #{tpu_custom_call.1} parent=1 // pred_check
      _
    $region63: #{tpu_custom_call.1} parent=1 // pred_check_branch
      %99 = sbr.rel (0) target = $region65
    $region64: #{tpu_custom_call.1} parent=1 // pred_region
      %100 = dma.done [#allocation3], 2048
    $region65: #{tpu_custom_call.1} parent=1 // pred_fallthru
      _
    // Predicated region
    $region66: #{tpu_custom_call.1} parent=1 // pred_check
      _
    $region67: #{tpu_custom_call.1} parent=1 // pred_check_branch
      %102 = sbr.rel (0) target = $region69
    $region68: #{tpu_custom_call.1} parent=1 // pred_region
      %103 = dma.done [#allocation6], 2048
    $region69: #{tpu_custom_call.1} parent=1 // pred_fallthru
      _
    // Predicated region
    $region70: #{tpu_custom_call.1} parent=1 // pred_check
      _
    $region71: #{tpu_custom_call.1} parent=1 // pred_check_branch
      %105 = sbr.rel (0) target = $region73
    $region72: #{tpu_custom_call.1} parent=1 // pred_region
      %106 = dma.done [#allocation6], 20480
    $region73: #{tpu_custom_call.1} parent=1 // pred_fallthru
      _
    // Predicated region
    $region74: #{tpu_custom_call.1} parent=1 // pred_check
      _
    $region75: #{tpu_custom_call.1} parent=1 // pred_check_branch
      %108 = sbr.rel (0) target = $region77
    $region76: #{tpu_custom_call.1} parent=1 // pred_region
      %109 = dma.done [#allocation9], 1024
    $region77: #{tpu_custom_call.1} parent=1 // pred_fallthru
      _
    %v111 = vld [vmem:[%s0] sm:$0xf]
    %v112 = vld [vmem:[%s0 + $0x4] sm:$0xf]
    %v113 = vld [vmem:[%s3] sm:$0xf]
    %v114 = vld [vmem:[%s3 + $0x4] sm:$0xf]
    %v115 = vld [vmem:[%s3 + $0x8] sm:$0xf]
    %v116 = vld [vmem:[%s3 + $0xc] sm:$0xf]
    %v117 = vld [vmem:[%s3 + $0x10] sm:$0xf]
    %v118 = vld [vmem:[%s3 + $0x14] sm:$0xf]
    %v119 = vld [vmem:[%s3 + $0x18] sm:$0xf]
    %v120 = vld [vmem:[%s3 + $0x1c] sm:$0xf]
    %v121 = vld [vmem:[%s3 + $0x20] sm:$0xf]
    %v122 = vld [vmem:[%s3 + $0x24] sm:$0xf]
    %v123 = vld [vmem:[%s3 + $0x28] sm:$0xf]
    %v124 = vld [vmem:[%s3 + $0x2c] sm:$0xf]
    %v125 = vld [vmem:[%s3 + $0x30] sm:$0xf]
    %v126 = vld [vmem:[%s3 + $0x34] sm:$0xf]
    %v127 = vld [vmem:[%s3 + $0x38] sm:$0xf]
    %v128 = vld [vmem:[%s3 + $0x3c] sm:$0xf]
    %v129 = vld [vmem:[%s4] sm:$0x1]
    %v131 = vlaneseq
    %v132 = vshrl.u32 %v131, 7
    %v133 = vsub.s32 0, %v132
    %v134 = vrot.slane %v129, %v133
    %v138 = vunpack.c.l.b16 %v111
    %v139 = vunpack.c.l.b16 %v112
    %v140 = vpack.c.b16 %v139, %v138
    %v158 = vunpack.c.l.b16 %v113
    %v159 = vunpack.c.l.b16 %v114
    %v160 = vunpack.c.l.b16 %v115
    %v161 = vunpack.c.l.b16 %v116
    %v162 = vunpack.c.l.b16 %v117
    %v163 = vunpack.c.l.b16 %v118
    %v164 = vunpack.c.l.b16 %v119
    %v165 = vunpack.c.l.b16 %v120
    %v166 = vunpack.c.l.b16 %v121
    %v167 = vunpack.c.l.b16 %v122
    %v168 = vunpack.c.l.b16 %v123
    %v169 = vunpack.c.l.b16 %v124
    %v170 = vunpack.c.l.b16 %v125
    %v171 = vunpack.c.l.b16 %v126
    %v172 = vunpack.c.l.b16 %v127
    %v173 = vunpack.c.l.b16 %v128
    %v174 = vpack.c.b16 %v159, %v158
    %v175 = vpack.c.b16 %v161, %v160
    %v176 = vpack.c.b16 %v163, %v162
    %v177 = vpack.c.b16 %v165, %v164
    %v178 = vpack.c.b16 %v167, %v166
    %v179 = vpack.c.b16 %v169, %v168
    %v180 = vpack.c.b16 %v171, %v170
    %v181 = vpack.c.b16 %v173, %v172
    %190 = vmatprep.subr.bf16.mxu0 0
    %191 = vmatpush1.bf16.msra.mxu0 %v181
    %192 = vmatprep.subr.bf16.mxu0 0
    %193 = vmatpush1.bf16.msra.mxu0 %v180
    %194 = vmatprep.subr.bf16.mxu0 0
    %195 = vmatpush1.bf16.msra.mxu0 %v179
    %196 = vmatprep.subr.bf16.mxu0 0
    %197 = vmatpush1.bf16.msra.mxu0 %v178
    %198 = vmatprep.subr.bf16.mxu0 0
    %199 = vmatpush1.bf16.msra.mxu0 %v177
    %200 = vmatprep.subr.bf16.mxu0 0
    %201 = vmatpush1.bf16.msra.mxu0 %v176
    %202 = vmatprep.subr.bf16.mxu0 0
    %203 = vmatpush1.bf16.msra.mxu0 %v175
    %204 = vmatprep.subr.bf16.mxu0 0
    %205 = vmatpush1.bf16.msra.mxu0 %v174
    %206 = vmatprep.subr.bf16.mxu0 0
    %207 = vmatpush2.bf16.msra.mxu0 0
    %208 = vmatprep.subr.bf16.mxu0 0
    %209 = vmatpush2.bf16.msra.mxu0 0
    %210 = vmatprep.subr.bf16.mxu0 0
    %211 = vmatpush2.bf16.msra.mxu0 0
    %212 = vmatprep.subr.bf16.mxu0 0
    %213 = vmatpush2.bf16.msra.mxu0 0
    %214 = vmatprep.subr.bf16.mxu0 0
    %215 = vmatpush2.bf16.msra.mxu0 0
    %216 = vmatprep.subr.bf16.mxu0 0
    %217 = vmatpush2.bf16.msra.mxu0 0
    %218 = vmatprep.subr.bf16.mxu0 0
    %219 = vmatpush2.bf16.msra.mxu0 0
    %220 = vmatprep.subr.bf16.mxu0 0
    %221 = vmatpush2.bf16.msra.mxu0 0
    %222 = vmatprep.mubr.bf16.mxu0 0
    %223 = vmatmul.mubr.bf16.gmra.mxu0 %v140
    %v224 = vpop.f32.mrf.mxu0
    %v225 = vadd.f32 %v134, %v224
    %v226 = vpop.f32.mrf.mxu0
    %v227 = vpop.f32.mrf.mxu0
    %v228 = vadd.f32 %v134, %v227
    %v229 = vpop.f32.mrf.mxu0
    %230 = vdwg.mxu0
    %v231 = vld [vmem:[%s2] sm:$0x1]
    %v232 = vld [vmem:[%s2 + $0x1] sm:$0x1]
    %v235 = vlaneseq
    %v236 = vshrl.u32 %v235, 7
    %v237 = vsub.s32 0, %v236
    %v238 = vrot.slane %v231, %v237
    %v239 = vlaneseq
    %v240 = vshrl.u32 %v239, 7
    %v241 = vsub.s32 0, %v240
    %v242 = vrot.slane %v232, %v241
    %v245 = vpack.c.bf16 %v228, %v225
    %v246 = vpack.c.bf16 %v242, %v238
    %v247 = vld [vmem:[#allocation5] sm:$0xf]
    %v248 = vld [vmem:[#allocation5 + $0x4] sm:$0xf]
    %v249 = vld [vmem:[#allocation5 + $0x8] sm:$0xf]
    %v250 = vld [vmem:[#allocation5 + $0xc] sm:$0xf]
    %v251 = vld [vmem:[#allocation5 + $0x10] sm:$0xf]
    %v252 = vld [vmem:[#allocation5 + $0x14] sm:$0xf]
    %v253 = vld [vmem:[#allocation5 + $0x18] sm:$0xf]
    %v254 = vld [vmem:[#allocation5 + $0x1c] sm:$0xf]
    %v255 = vld [vmem:[#allocation5 + $0x20] sm:$0xf]
    %v256 = vld [vmem:[#allocation5 + $0x24] sm:$0xf]
    %v257 = vld [vmem:[#allocation5 + $0x28] sm:$0xf]
    %v258 = vld [vmem:[#allocation5 + $0x2c] sm:$0xf]
    %v259 = vld [vmem:[#allocation5 + $0x30] sm:$0xf]
    %v260 = vld [vmem:[#allocation5 + $0x34] sm:$0xf]
    %v261 = vld [vmem:[#allocation5 + $0x38] sm:$0xf]
    %v262 = vld [vmem:[#allocation5 + $0x3c] sm:$0xf]
    %v263 = vld [vmem:[#allocation5 + $0x40] sm:$0xf]
    %v264 = vld [vmem:[#allocation5 + $0x44] sm:$0xf]
    %v265 = vld [vmem:[#allocation5 + $0x48] sm:$0xf]
    %v266 = vld [vmem:[#allocation5 + $0x4c] sm:$0xf]
    %v267 = vld [vmem:[#allocation5 + $0x50] sm:$0xf]
    %v268 = vld [vmem:[#allocation5 + $0x54] sm:$0xf]
    %v269 = vld [vmem:[#allocation5 + $0x58] sm:$0xf]
    %v270 = vld [vmem:[#allocation5 + $0x5c] sm:$0xf]
    %v271 = vld [vmem:[#allocation5 + $0x60] sm:$0xf]
    %v272 = vld [vmem:[#allocation5 + $0x64] sm:$0xf]
    %v273 = vld [vmem:[#allocation5 + $0x68] sm:$0xf]
    %v274 = vld [vmem:[#allocation5 + $0x6c] sm:$0xf]
    %v275 = vld [vmem:[#allocation5 + $0x70] sm:$0xf]
    %v276 = vld [vmem:[#allocation5 + $0x74] sm:$0xf]
    %v277 = vld [vmem:[#allocation5 + $0x78] sm:$0xf]
    %v278 = vld [vmem:[#allocation5 + $0x7c] sm:$0xf]
    %v279 = vld [vmem:[%s6] sm:$0x1]
    %v281 = vlaneseq
    %v282 = vshrl.u32 %v281, 7
    %v283 = vsub.s32 0, %v282
    %v284 = vrot.slane %v279, %v283
    %v318 = vunpack.c.l.b16 %v247
    %v319 = vunpack.c.l.b16 %v248
    %v320 = vunpack.c.l.b16 %v249
    %v321 = vunpack.c.l.b16 %v250
    %v322 = vunpack.c.l.b16 %v251
    %v323 = vunpack.c.l.b16 %v252
    %v324 = vunpack.c.l.b16 %v253
    %v325 = vunpack.c.l.b16 %v254
    %v326 = vunpack.c.l.b16 %v255
    %v327 = vunpack.c.l.b16 %v256
    %v328 = vunpack.c.l.b16 %v257
    %v329 = vunpack.c.l.b16 %v258
    %v330 = vunpack.c.l.b16 %v259
    %v331 = vunpack.c.l.b16 %v260
    %v332 = vunpack.c.l.b16 %v261
    %v333 = vunpack.c.l.b16 %v262
    %v334 = vunpack.c.l.b16 %v263
    %v335 = vunpack.c.l.b16 %v264
    %v336 = vunpack.c.l.b16 %v265
    %v337 = vunpack.c.l.b16 %v266
    %v338 = vunpack.c.l.b16 %v267
    %v339 = vunpack.c.l.b16 %v268
    %v340 = vunpack.c.l.b16 %v269
    %v341 = vunpack.c.l.b16 %v270
    %v342 = vunpack.c.l.b16 %v271
    %v343 = vunpack.c.l.b16 %v272
    %v344 = vunpack.c.l.b16 %v273
    %v345 = vunpack.c.l.b16 %v274
    %v346 = vunpack.c.l.b16 %v275
    %v347 = vunpack.c.l.b16 %v276
    %v348 = vunpack.c.l.b16 %v277
    %v349 = vunpack.c.l.b16 %v278
    %v350 = vpack.c.b16 %v319, %v318
    %v351 = vpack.c.b16 %v321, %v320
    %v352 = vpack.c.b16 %v323, %v322
    %v353 = vpack.c.b16 %v325, %v324
    %v354 = vpack.c.b16 %v327, %v326
    %v355 = vpack.c.b16 %v329, %v328
    %v356 = vpack.c.b16 %v331, %v330
    %v357 = vpack.c.b16 %v333, %v332
    %v358 = vpack.c.b16 %v335, %v334
    %v359 = vpack.c.b16 %v337, %v336
    %v360 = vpack.c.b16 %v339, %v338
    %v361 = vpack.c.b16 %v341, %v340
    %v362 = vpack.c.b16 %v343, %v342
    %v363 = vpack.c.b16 %v345, %v344
    %v364 = vpack.c.b16 %v347, %v346
    %v365 = vpack.c.b16 %v349, %v348
    %382 = vmatprep.subr.bf16.mxu0 0
    %383 = vmatpush1.bf16.msra.mxu0 %v357
    %384 = vmatprep.subr.bf16.mxu0 0
    %385 = vmatpush1.bf16.msra.mxu0 %v356
    %386 = vmatprep.subr.bf16.mxu0 0
    %387 = vmatpush1.bf16.msra.mxu0 %v355
    %388 = vmatprep.subr.bf16.mxu0 0
    %389 = vmatpush1.bf16.msra.mxu0 %v354
    %390 = vmatprep.subr.bf16.mxu0 0
    %391 = vmatpush1.bf16.msra.mxu0 %v353
    %392 = vmatprep.subr.bf16.mxu0 0
    %393 = vmatpush1.bf16.msra.mxu0 %v352
    %394 = vmatprep.subr.bf16.mxu0 0
    %395 = vmatpush1.bf16.msra.mxu0 %v351
    %396 = vmatprep.subr.bf16.mxu0 0
    %397 = vmatpush1.bf16.msra.mxu0 %v350
    %398 = vmatprep.subr.bf16.mxu0 0
    %399 = vmatpush2.bf16.msra.mxu0 %v365
    %400 = vmatprep.subr.bf16.mxu0 0
    %401 = vmatpush2.bf16.msra.mxu0 %v364
    %402 = vmatprep.subr.bf16.mxu0 0
    %403 = vmatpush2.bf16.msra.mxu0 %v363
    %404 = vmatprep.subr.bf16.mxu0 0
    %405 = vmatpush2.bf16.msra.mxu0 %v362
    %406 = vmatprep.subr.bf16.mxu0 0
    %407 = vmatpush2.bf16.msra.mxu0 %v361
    %408 = vmatprep.subr.bf16.mxu0 0
    %409 = vmatpush2.bf16.msra.mxu0 %v360
    %410 = vmatprep.subr.bf16.mxu0 0
    %411 = vmatpush2.bf16.msra.mxu0 %v359
    %412 = vmatprep.subr.bf16.mxu0 0
    %413 = vmatpush2.bf16.msra.mxu0 %v358
    %414 = vmatprep.mubr.bf16.mxu0 %v246
    %415 = vmatmul.mubr.bf16.gmra.mxu0 %v245
    %v416 = vpop.f32.mrf.mxu0
    %v417 = vadd.f32 %v284, %v416
    %v418 = vpop.f32.mrf.mxu0
    %v419 = vpop.f32.mrf.mxu0
    %v420 = vadd.f32 %v284, %v419
    %v421 = vpop.f32.mrf.mxu0
    %422 = vdwg.mxu0
    %v425 = vunpack.c.l.b16 %v245
    %v426 = vunpack.c.l.b16 %v246
    %v427 = vunpack.c.h.b16 %v245
    %v428 = vunpack.c.h.b16 %v246
    %v429 = vpack.c.b16 %v425, %v425
    %v430 = vpack.c.b16 %v426, %v426
    %v431 = vpack.c.b16 %v427, %v427
    %v432 = vpack.c.b16 %v428, %v428
    %v433 = vrot.slane %v429, 6
    %v434 = vrot.slane %v430, 6
    %v435 = vrot.slane %v431, 6
    %v436 = vrot.slane %v432, 6
    %vm437 = vcmask 1041408
    %v440 = vsel %vm437, 0, %v433
    %v442 = vsel %vm437, 0, %v434
    %v444 = vsel %vm437, 0, %v435
    %v446 = vsel %vm437, 0, %v436
    %v451 = vunpack.c.l.b16 %v440
    %v452 = vunpack.c.l.b16 %v442
    %v453 = vunpack.c.l.b16 %v444
    %v454 = vunpack.c.l.b16 %v446
    %v455 = vld [vmem:[#allocation7] sm:$0xff]
    %v456 = vld [vmem:[#allocation7 + $0x8] sm:$0xff]
    %v457 = vld [vmem:[#allocation7 + $0x10] sm:$0xff]
    %v458 = vld [vmem:[#allocation7 + $0x18] sm:$0xff]
    %v459 = vld [vmem:[#allocation7 + $0x20] sm:$0xff]
    %v460 = vld [vmem:[#allocation7 + $0x28] sm:$0xff]
    %v461 = vld [vmem:[#allocation7 + $0x30] sm:$0xff]
    %v462 = vld [vmem:[#allocation7 + $0x38] sm:$0xff]
    %v463 = vld [vmem:[#allocation7 + $0x40] sm:$0xff]
    %v464 = vld [vmem:[#allocation7 + $0x48] sm:$0xff]
    %v465 = vld [vmem:[#allocation7 + $0x50] sm:$0xff]
    %v466 = vld [vmem:[#allocation7 + $0x58] sm:$0xff]
    %v467 = vld [vmem:[#allocation7 + $0x60] sm:$0xff]
    %v468 = vld [vmem:[#allocation7 + $0x68] sm:$0xff]
    %v469 = vld [vmem:[#allocation7 + $0x70] sm:$0xff]
    %v470 = vld [vmem:[#allocation7 + $0x78] sm:$0xff]
    %v471 = vld [vmem:[#allocation7 + $0x80] sm:$0xff]
    %v472 = vld [vmem:[#allocation7 + $0x88] sm:$0xff]
    %v473 = vld [vmem:[#allocation7 + $0x90] sm:$0xff]
    %v474 = vld [vmem:[#allocation7 + $0x98] sm:$0xff]
    %v475 = vld [vmem:[#allocation7 + $0xa0] sm:$0xff]
    %v476 = vld [vmem:[#allocation7 + $0xa8] sm:$0xff]
    %v477 = vld [vmem:[#allocation7 + $0xb0] sm:$0xff]
    %v478 = vld [vmem:[#allocation7 + $0xb8] sm:$0xff]
    %v479 = vld [vmem:[#allocation7 + $0xc0] sm:$0xff]
    %v480 = vld [vmem:[#allocation7 + $0xc8] sm:$0xff]
    %v481 = vld [vmem:[#allocation7 + $0xd0] sm:$0xff]
    %v482 = vld [vmem:[#allocation7 + $0xd8] sm:$0xff]
    %v483 = vld [vmem:[#allocation7 + $0xe0] sm:$0xff]
    %v484 = vld [vmem:[#allocation7 + $0xe8] sm:$0xff]
    %v485 = vld [vmem:[#allocation7 + $0xf0] sm:$0xff]
    %v486 = vld [vmem:[#allocation7 + $0xf8] sm:$0xff]
    %v487 = vunpack.c.h.b16 %v440
    %v488 = vunpack.c.h.b16 %v442
    %v489 = vunpack.c.h.b16 %v444
    %v490 = vunpack.c.h.b16 %v446
    %v491 = vpack.c.b16 %v452, %v451
    %v492 = vpack.c.b16 %v488, %v487
    %v493 = vpack.c.b16 %v454, %v453
    %v494 = vpack.c.b16 %v490, %v489
    %vm495 = vsmask.f32 3328
    %vm496 = vsmask.f32 7440
    %vm497 = vmor %vm495, %vm496
    %v499 = vshrl.u32 %v491, 16
    %v501 = vrot.slane %v499, 4
    %v502 = vshll.u32 %v491, 16
    %v504 = vrot.slane %v502, 5
    %v505 = vor.u32 %v501, %v504
    %v506 = vrot.slane %v505, 4
    %v508 = vshll.u32 %v492, 16
    %v510 = vrot.slane %v508, 5
    %v511 = vsel %vm497, %v506, %v510
    %v513 = vshrl.u32 %v493, 16
    %v515 = vrot.slane %v513, 4
    %v516 = vshll.u32 %v493, 16
    %v518 = vrot.slane %v516, 5
    %v519 = vor.u32 %v515, %v518
    %v520 = vrot.slane %v519, 4
    %v522 = vshll.u32 %v494, 16
    %v524 = vrot.slane %v522, 5
    %v525 = vsel %vm497, %v520, %v524
    %s526 = scalar_lea.vmem [#allocation7], 256
    %v527 = vld [vmem:[%s526] sm:$0xff]
    %v528 = vld [vmem:[%s526 + $0x8] sm:$0xff]
    %v529 = vld [vmem:[%s526 + $0x10] sm:$0xff]
    %v530 = vld [vmem:[%s526 + $0x18] sm:$0xff]
    %v531 = vld [vmem:[%s526 + $0x20] sm:$0xff]
    %v532 = vld [vmem:[%s526 + $0x28] sm:$0xff]
    %v533 = vld [vmem:[%s526 + $0x30] sm:$0xff]
    %v534 = vld [vmem:[%s526 + $0x38] sm:$0xff]
    %v535 = vld [vmem:[%s526 + $0x40] sm:$0xff]
    %v536 = vld [vmem:[%s526 + $0x48] sm:$0xff]
    %v537 = vld [vmem:[%s526 + $0x50] sm:$0xff]
    %v538 = vld [vmem:[%s526 + $0x58] sm:$0xff]
    %v539 = vld [vmem:[%s526 + $0x60] sm:$0xff]
    %v540 = vld [vmem:[%s526 + $0x68] sm:$0xff]
    %v541 = vld [vmem:[%s526 + $0x70] sm:$0xff]
    %v542 = vld [vmem:[%s526 + $0x78] sm:$0xff]
    %v543 = vld [vmem:[%s526 + $0x80] sm:$0xff]
    %v544 = vld [vmem:[%s526 + $0x88] sm:$0xff]
    %v545 = vld [vmem:[%s526 + $0x90] sm:$0xff]
    %v546 = vld [vmem:[%s526 + $0x98] sm:$0xff]
    %v547 = vld [vmem:[%s526 + $0xa0] sm:$0xff]
    %v548 = vld [vmem:[%s526 + $0xa8] sm:$0xff]
    %v549 = vld [vmem:[%s526 + $0xb0] sm:$0xff]
    %v550 = vld [vmem:[%s526 + $0xb8] sm:$0xff]
    %v551 = vld [vmem:[%s526 + $0xc0] sm:$0xff]
    %v552 = vld [vmem:[%s526 + $0xc8] sm:$0xff]
    %v553 = vld [vmem:[%s526 + $0xd0] sm:$0xff]
    %v554 = vld [vmem:[%s526 + $0xd8] sm:$0xff]
    %v555 = vld [vmem:[%s526 + $0xe0] sm:$0xff]
    %v556 = vld [vmem:[%s526 + $0xe8] sm:$0xff]
    %v557 = vld [vmem:[%s526 + $0xf0] sm:$0xff]
    %v558 = vld [vmem:[%s526 + $0xf8] sm:$0xff]
    %v559 = vunpack.c.l.b16 %v511
    %v560 = vunpack.c.h.b16 %v511
    %v561 = vunpack.c.l.b16 %v525
    %v562 = vunpack.c.h.b16 %v525
    %v563 = vpack.c.b16 %v561, %v559
    %v564 = vpack.c.b16 %v562, %v560
    %v599 = vunpack.c.l.b16 %v527
    %v600 = vunpack.c.h.b16 %v527
    %v601 = vunpack.c.l.b16 %v528
    %v602 = vunpack.c.h.b16 %v528
    %v603 = vunpack.c.l.b16 %v529
    %v604 = vunpack.c.h.b16 %v529
    %v605 = vunpack.c.l.b16 %v530
    %v606 = vunpack.c.h.b16 %v530
    %v607 = vunpack.c.l.b16 %v531
    %v608 = vunpack.c.h.b16 %v531
    %v609 = vunpack.c.l.b16 %v532
    %v610 = vunpack.c.h.b16 %v532
    %v611 = vunpack.c.l.b16 %v533
    %v612 = vunpack.c.h.b16 %v533
    %v613 = vunpack.c.l.b16 %v534
    %v614 = vunpack.c.h.b16 %v534
    %v615 = vunpack.c.l.b16 %v535
    %v616 = vunpack.c.h.b16 %v535
    %v617 = vunpack.c.l.b16 %v536
    %v618 = vunpack.c.h.b16 %v536
    %v619 = vunpack.c.l.b16 %v537
    %v620 = vunpack.c.h.b16 %v537
    %v621 = vunpack.c.l.b16 %v538
    %v622 = vunpack.c.h.b16 %v538
    %v623 = vunpack.c.l.b16 %v539
    %v624 = vunpack.c.h.b16 %v539
    %v625 = vunpack.c.l.b16 %v540
    %v626 = vunpack.c.h.b16 %v540
    %v627 = vunpack.c.l.b16 %v541
    %v628 = vunpack.c.h.b16 %v541
    %v629 = vunpack.c.l.b16 %v542
    %v630 = vunpack.c.h.b16 %v542
    %v631 = vunpack.c.l.b16 %v543
    %v632 = vunpack.c.h.b16 %v543
    %v633 = vunpack.c.l.b16 %v544
    %v634 = vunpack.c.h.b16 %v544
    %v635 = vunpack.c.l.b16 %v545
    %v636 = vunpack.c.h.b16 %v545
    %v637 = vunpack.c.l.b16 %v546
    %v638 = vunpack.c.h.b16 %v546
    %v639 = vunpack.c.l.b16 %v547
    %v640 = vunpack.c.h.b16 %v547
    %v641 = vunpack.c.l.b16 %v548
    %v642 = vunpack.c.h.b16 %v548
    %v643 = vunpack.c.l.b16 %v549
    %v644 = vunpack.c.h.b16 %v549
    %v645 = vunpack.c.l.b16 %v550
    %v646 = vunpack.c.h.b16 %v550
    %v647 = vunpack.c.l.b16 %v551
    %v648 = vunpack.c.h.b16 %v551
    %v649 = vunpack.c.l.b16 %v552
    %v650 = vunpack.c.h.b16 %v552
    %v651 = vunpack.c.l.b16 %v553
    %v652 = vunpack.c.h.b16 %v553
    %v653 = vunpack.c.l.b16 %v554
    %v654 = vunpack.c.h.b16 %v554
    %v655 = vunpack.c.l.b16 %v555
    %v656 = vunpack.c.h.b16 %v555
    %v657 = vunpack.c.l.b16 %v556
    %v658 = vunpack.c.h.b16 %v556
    %v659 = vunpack.c.l.b16 %v557
    %v660 = vunpack.c.h.b16 %v557
    %v661 = vunpack.c.l.b16 %v558
    %v662 = vunpack.c.h.b16 %v558
    %v663 = vpack.c.b16 %v601, %v599
    %v664 = vpack.c.b16 %v602, %v600
    %v665 = vpack.c.b16 %v605, %v603
    %v666 = vpack.c.b16 %v606, %v604
    %v667 = vpack.c.b16 %v609, %v607
    %v668 = vpack.c.b16 %v610, %v608
    %v669 = vpack.c.b16 %v613, %v611
    %v670 = vpack.c.b16 %v614, %v612
    %v671 = vpack.c.b16 %v617, %v615
    %v672 = vpack.c.b16 %v618, %v616
    %v673 = vpack.c.b16 %v621, %v619
    %v674 = vpack.c.b16 %v622, %v620
    %v675 = vpack.c.b16 %v625, %v623
    %v676 = vpack.c.b16 %v626, %v624
    %v677 = vpack.c.b16 %v629, %v627
    %v678 = vpack.c.b16 %v630, %v628
    %v679 = vpack.c.b16 %v633, %v631
    %v680 = vpack.c.b16 %v634, %v632
    %v681 = vpack.c.b16 %v637, %v635
    %v682 = vpack.c.b16 %v638, %v636
    %v683 = vpack.c.b16 %v641, %v639
    %v684 = vpack.c.b16 %v642, %v640
    %v685 = vpack.c.b16 %v645, %v643
    %v686 = vpack.c.b16 %v646, %v644
    %v687 = vpack.c.b16 %v649, %v647
    %v688 = vpack.c.b16 %v650, %v648
    %v689 = vpack.c.b16 %v653, %v651
    %v690 = vpack.c.b16 %v654, %v652
    %v691 = vpack.c.b16 %v657, %v655
    %v692 = vpack.c.b16 %v658, %v656
    %v693 = vpack.c.b16 %v661, %v659
    %v694 = vpack.c.b16 %v662, %v660
    %727 = vmatprep.subr.bf16.mxu0 %v678
    %728 = vmatpush1.bf16.msra.mxu0 %v677
    %729 = vmatprep.subr.bf16.mxu0 %v676
    %730 = vmatpush1.bf16.msra.mxu0 %v675
    %731 = vmatprep.subr.bf16.mxu0 %v674
    %732 = vmatpush1.bf16.msra.mxu0 %v673
    %733 = vmatprep.subr.bf16.mxu0 %v672
    %734 = vmatpush1.bf16.msra.mxu0 %v671
    %735 = vmatprep.subr.bf16.mxu0 %v670
    %736 = vmatpush1.bf16.msra.mxu0 %v669
    %737 = vmatprep.subr.bf16.mxu0 %v668
    %738 = vmatpush1.bf16.msra.mxu0 %v667
    %739 = vmatprep.subr.bf16.mxu0 %v666
    %740 = vmatpush1.bf16.msra.mxu0 %v665
    %741 = vmatprep.subr.bf16.mxu0 %v664
    %742 = vmatpush1.bf16.msra.mxu0 %v663
    %743 = vmatprep.subr.bf16.mxu0 %v694
    %744 = vmatpush2.bf16.msra.mxu0 %v693
    %745 = vmatprep.subr.bf16.mxu0 %v692
    %746 = vmatpush2.bf16.msra.mxu0 %v691
    %747 = vmatprep.subr.bf16.mxu0 %v690
    %748 = vmatpush2.bf16.msra.mxu0 %v689
    %749 = vmatprep.subr.bf16.mxu0 %v688
    %750 = vmatpush2.bf16.msra.mxu0 %v687
    %751 = vmatprep.subr.bf16.mxu0 %v686
    %752 = vmatpush2.bf16.msra.mxu0 %v685
    %753 = vmatprep.subr.bf16.mxu0 %v684
    %754 = vmatpush2.bf16.msra.mxu0 %v683
    %755 = vmatprep.subr.bf16.mxu0 %v682
    %756 = vmatpush2.bf16.msra.mxu0 %v681
    %757 = vmatprep.subr.bf16.mxu0 %v680
    %758 = vmatpush2.bf16.msra.mxu0 %v679
    %759 = vmatprep.mubr.bf16.mxu0 %v564
    %760 = vmatmul.mubr.bf16.gmra.mxu0 %v563
    %v761 = vpop.f32.mrf.mxu0
    %v762 = vadd.f32 0.0, %v761
    %v763 = vpop.f32.mrf.mxu0
    %v764 = vadd.f32 0.0, %v763
    %v765 = vpop.f32.mrf.mxu0
    %v766 = vadd.f32 0.0, %v765
    %v767 = vpop.f32.mrf.mxu0
    %v768 = vadd.f32 0.0, %v767
    %769 = vdwg.mxu0
    %v770 = vpack.c.b16 %v453, %v451
    %v771 = vpack.c.b16 %v454, %v452
    %v806 = vunpack.c.l.b16 %v455
    %v807 = vunpack.c.h.b16 %v455
    %v808 = vunpack.c.l.b16 %v456
    %v809 = vunpack.c.h.b16 %v456
    %v810 = vunpack.c.l.b16 %v457
    %v811 = vunpack.c.h.b16 %v457
    %v812 = vunpack.c.l.b16 %v458
    %v813 = vunpack.c.h.b16 %v458
    %v814 = vunpack.c.l.b16 %v459
    %v815 = vunpack.c.h.b16 %v459
    %v816 = vunpack.c.l.b16 %v460
    %v817 = vunpack.c.h.b16 %v460
    %v818 = vunpack.c.l.b16 %v461
    %v819 = vunpack.c.h.b16 %v461
    %v820 = vunpack.c.l.b16 %v462
    %v821 = vunpack.c.h.b16 %v462
    %v822 = vunpack.c.l.b16 %v463
    %v823 = vunpack.c.h.b16 %v463
    %v824 = vunpack.c.l.b16 %v464
    %v825 = vunpack.c.h.b16 %v464
    %v826 = vunpack.c.l.b16 %v465
    %v827 = vunpack.c.h.b16 %v465
    %v828 = vunpack.c.l.b16 %v466
    %v829 = vunpack.c.h.b16 %v466
    %v830 = vunpack.c.l.b16 %v467
    %v831 = vunpack.c.h.b16 %v467
    %v832 = vunpack.c.l.b16 %v468
    %v833 = vunpack.c.h.b16 %v468
    %v834 = vunpack.c.l.b16 %v469
    %v835 = vunpack.c.h.b16 %v469
    %v836 = vunpack.c.l.b16 %v470
    %v837 = vunpack.c.h.b16 %v470
    %v838 = vunpack.c.l.b16 %v471
    %v839 = vunpack.c.h.b16 %v471
    %v840 = vunpack.c.l.b16 %v472
    %v841 = vunpack.c.h.b16 %v472
    %v842 = vunpack.c.l.b16 %v473
    %v843 = vunpack.c.h.b16 %v473
    %v844 = vunpack.c.l.b16 %v474
    %v845 = vunpack.c.h.b16 %v474
    %v846 = vunpack.c.l.b16 %v475
    %v847 = vunpack.c.h.b16 %v475
    %v848 = vunpack.c.l.b16 %v476
    %v849 = vunpack.c.h.b16 %v476
    %v850 = vunpack.c.l.b16 %v477
    %v851 = vunpack.c.h.b16 %v477
    %v852 = vunpack.c.l.b16 %v478
    %v853 = vunpack.c.h.b16 %v478
    %v854 = vunpack.c.l.b16 %v479
    %v855 = vunpack.c.h.b16 %v479
    %v856 = vunpack.c.l.b16 %v480
    %v857 = vunpack.c.h.b16 %v480
    %v858 = vunpack.c.l.b16 %v481
    %v859 = vunpack.c.h.b16 %v481
    %v860 = vunpack.c.l.b16 %v482
    %v861 = vunpack.c.h.b16 %v482
    %v862 = vunpack.c.l.b16 %v483
    %v863 = vunpack.c.h.b16 %v483
    %v864 = vunpack.c.l.b16 %v484
    %v865 = vunpack.c.h.b16 %v484
    %v866 = vunpack.c.l.b16 %v485
    %v867 = vunpack.c.h.b16 %v485
    %v868 = vunpack.c.l.b16 %v486
    %v869 = vunpack.c.h.b16 %v486
    %v870 = vpack.c.b16 %v808, %v806
    %v871 = vpack.c.b16 %v809, %v807
    %v872 = vpack.c.b16 %v812, %v810
    %v873 = vpack.c.b16 %v813, %v811
    %v874 = vpack.c.b16 %v816, %v814
    %v875 = vpack.c.b16 %v817, %v815
    %v876 = vpack.c.b16 %v820, %v818
    %v877 = vpack.c.b16 %v821, %v819
    %v878 = vpack.c.b16 %v824, %v822
    %v879 = vpack.c.b16 %v825, %v823
    %v880 = vpack.c.b16 %v828, %v826
    %v881 = vpack.c.b16 %v829, %v827
    %v882 = vpack.c.b16 %v832, %v830
    %v883 = vpack.c.b16 %v833, %v831
    %v884 = vpack.c.b16 %v836, %v834
    %v885 = vpack.c.b16 %v837, %v835
    %v886 = vpack.c.b16 %v840, %v838
    %v887 = vpack.c.b16 %v841, %v839
    %v888 = vpack.c.b16 %v844, %v842
    %v889 = vpack.c.b16 %v845, %v843
    %v890 = vpack.c.b16 %v848, %v846
    %v891 = vpack.c.b16 %v849, %v847
    %v892 = vpack.c.b16 %v852, %v850
    %v893 = vpack.c.b16 %v853, %v851
    %v894 = vpack.c.b16 %v856, %v854
    %v895 = vpack.c.b16 %v857, %v855
    %v896 = vpack.c.b16 %v860, %v858
    %v897 = vpack.c.b16 %v861, %v859
    %v898 = vpack.c.b16 %v864, %v862
    %v899 = vpack.c.b16 %v865, %v863
    %v900 = vpack.c.b16 %v868, %v866
    %v901 = vpack.c.b16 %v869, %v867
    %934 = vmatprep.subr.bf16.mxu0 %v885
    %935 = vmatpush1.bf16.msra.mxu0 %v884
    %936 = vmatprep.subr.bf16.mxu0 %v883
    %937 = vmatpush1.bf16.msra.mxu0 %v882
    %938 = vmatprep.subr.bf16.mxu0 %v881
    %939 = vmatpush1.bf16.msra.mxu0 %v880
    %940 = vmatprep.subr.bf16.mxu0 %v879
    %941 = vmatpush1.bf16.msra.mxu0 %v878
    %942 = vmatprep.subr.bf16.mxu0 %v877
    %943 = vmatpush1.bf16.msra.mxu0 %v876
    %944 = vmatprep.subr.bf16.mxu0 %v875
    %945 = vmatpush1.bf16.msra.mxu0 %v874
    %946 = vmatprep.subr.bf16.mxu0 %v873
    %947 = vmatpush1.bf16.msra.mxu0 %v872
    %948 = vmatprep.subr.bf16.mxu0 %v871
    %949 = vmatpush1.bf16.msra.mxu0 %v870
    %950 = vmatprep.subr.bf16.mxu0 %v901
    %951 = vmatpush2.bf16.msra.mxu0 %v900
    %952 = vmatprep.subr.bf16.mxu0 %v899
    %953 = vmatpush2.bf16.msra.mxu0 %v898
    %954 = vmatprep.subr.bf16.mxu0 %v897
    %955 = vmatpush2.bf16.msra.mxu0 %v896
    %956 = vmatprep.subr.bf16.mxu0 %v895
    %957 = vmatpush2.bf16.msra.mxu0 %v894
    %958 = vmatprep.subr.bf16.mxu0 %v893
    %959 = vmatpush2.bf16.msra.mxu0 %v892
    %960 = vmatprep.subr.bf16.mxu0 %v891
    %961 = vmatpush2.bf16.msra.mxu0 %v890
    %962 = vmatprep.subr.bf16.mxu0 %v889
    %963 = vmatpush2.bf16.msra.mxu0 %v888
    %964 = vmatprep.subr.bf16.mxu0 %v887
    %965 = vmatpush2.bf16.msra.mxu0 %v886
    %966 = vmatprep.mubr.bf16.mxu0 %v771
    %967 = vmatmul.mubr.bf16.gmra.mxu0 %v770
    %v968 = vpop.f32.mrf.mxu0
    %v969 = vadd.f32 %v762, %v968
    %v970 = vpop.f32.mrf.mxu0
    %v971 = vadd.f32 %v764, %v970
    %v972 = vpop.f32.mrf.mxu0
    %v973 = vadd.f32 %v766, %v972
    %v974 = vpop.f32.mrf.mxu0
    %v975 = vadd.f32 %v768, %v974
    %976 = vdwg.mxu0
    %vm977 = vcmask 1042432
    %vm978 = vcmask 1046532
    %vm979 = vmor %vm977, %vm978
    %v980 = vrot.slane %v491, 5
    %v981 = vrot.slane %v980, 4
    %v982 = vrot.slane %v492, 5
    %v983 = vsel %vm979, %v981, %v982
    %v984 = vrot.slane %v493, 5
    %v985 = vrot.slane %v984, 4
    %v986 = vrot.slane %v494, 5
    %v987 = vsel %vm979, %v985, %v986
    %s988 = scalar_lea.vmem [#allocation7], 512
    %v989 = vld [vmem:[%s988] sm:$0xff]
    %v990 = vld [vmem:[%s988 + $0x8] sm:$0xff]
    %v991 = vld [vmem:[%s988 + $0x10] sm:$0xff]
    %v992 = vld [vmem:[%s988 + $0x18] sm:$0xff]
    %v993 = vld [vmem:[%s988 + $0x20] sm:$0xff]
    %v994 = vld [vmem:[%s988 + $0x28] sm:$0xff]
    %v995 = vld [vmem:[%s988 + $0x30] sm:$0xff]
    %v996 = vld [vmem:[%s988 + $0x38] sm:$0xff]
    %v997 = vld [vmem:[%s988 + $0x40] sm:$0xff]
    %v998 = vld [vmem:[%s988 + $0x48] sm:$0xff]
    %v999 = vld [vmem:[%s988 + $0x50] sm:$0xff]
    %v1000 = vld [vmem:[%s988 + $0x58] sm:$0xff]
    %v1001 = vld [vmem:[%s988 + $0x60] sm:$0xff]
    %v1002 = vld [vmem:[%s988 + $0x68] sm:$0xff]
    %v1003 = vld [vmem:[%s988 + $0x70] sm:$0xff]
    %v1004 = vld [vmem:[%s988 + $0x78] sm:$0xff]
    %v1005 = vld [vmem:[%s988 + $0x80] sm:$0xff]
    %v1006 = vld [vmem:[%s988 + $0x88] sm:$0xff]
    %v1007 = vld [vmem:[%s988 + $0x90] sm:$0xff]
    %v1008 = vld [vmem:[%s988 + $0x98] sm:$0xff]
    %v1009 = vld [vmem:[%s988 + $0xa0] sm:$0xff]
    %v1010 = vld [vmem:[%s988 + $0xa8] sm:$0xff]
    %v1011 = vld [vmem:[%s988 + $0xb0] sm:$0xff]
    %v1012 = vld [vmem:[%s988 + $0xb8] sm:$0xff]
    %v1013 = vld [vmem:[%s988 + $0xc0] sm:$0xff]
    %v1014 = vld [vmem:[%s988 + $0xc8] sm:$0xff]
    %v1015 = vld [vmem:[%s988 + $0xd0] sm:$0xff]
    %v1016 = vld [vmem:[%s988 + $0xd8] sm:$0xff]
    %v1017 = vld [vmem:[%s988 + $0xe0] sm:$0xff]
    %v1018 = vld [vmem:[%s988 + $0xe8] sm:$0xff]
    %v1019 = vld [vmem:[%s988 + $0xf0] sm:$0xff]
    %v1020 = vld [vmem:[%s988 + $0xf8] sm:$0xff]
    %v1021 = vunpack.c.l.b16 %v983
    %v1022 = vunpack.c.h.b16 %v983
    %v1023 = vunpack.c.l.b16 %v987
    %v1024 = vunpack.c.h.b16 %v987
    %v1025 = vpack.c.b16 %v1023, %v1021
    %v1026 = vpack.c.b16 %v1024, %v1022
    %v1061 = vunpack.c.l.b16 %v989
    %v1062 = vunpack.c.h.b16 %v989
    %v1063 = vunpack.c.l.b16 %v990
    %v1064 = vunpack.c.h.b16 %v990
    %v1065 = vunpack.c.l.b16 %v991
    %v1066 = vunpack.c.h.b16 %v991
    %v1067 = vunpack.c.l.b16 %v992
    %v1068 = vunpack.c.h.b16 %v992
    %v1069 = vunpack.c.l.b16 %v993
    %v1070 = vunpack.c.h.b16 %v993
    %v1071 = vunpack.c.l.b16 %v994
    %v1072 = vunpack.c.h.b16 %v994
    %v1073 = vunpack.c.l.b16 %v995
    %v1074 = vunpack.c.h.b16 %v995
    %v1075 = vunpack.c.l.b16 %v996
    %v1076 = vunpack.c.h.b16 %v996
    %v1077 = vunpack.c.l.b16 %v997
    %v1078 = vunpack.c.h.b16 %v997
    %v1079 = vunpack.c.l.b16 %v998
    %v1080 = vunpack.c.h.b16 %v998
    %v1081 = vunpack.c.l.b16 %v999
    %v1082 = vunpack.c.h.b16 %v999
    %v1083 = vunpack.c.l.b16 %v1000
    %v1084 = vunpack.c.h.b16 %v1000
    %v1085 = vunpack.c.l.b16 %v1001
    %v1086 = vunpack.c.h.b16 %v1001
    %v1087 = vunpack.c.l.b16 %v1002
    %v1088 = vunpack.c.h.b16 %v1002
    %v1089 = vunpack.c.l.b16 %v1003
    %v1090 = vunpack.c.h.b16 %v1003
    %v1091 = vunpack.c.l.b16 %v1004
    %v1092 = vunpack.c.h.b16 %v1004
    %v1093 = vunpack.c.l.b16 %v1005
    %v1094 = vunpack.c.h.b16 %v1005
    %v1095 = vunpack.c.l.b16 %v1006
    %v1096 = vunpack.c.h.b16 %v1006
    %v1097 = vunpack.c.l.b16 %v1007
    %v1098 = vunpack.c.h.b16 %v1007
    %v1099 = vunpack.c.l.b16 %v1008
    %v1100 = vunpack.c.h.b16 %v1008
    %v1101 = vunpack.c.l.b16 %v1009
    %v1102 = vunpack.c.h.b16 %v1009
    %v1103 = vunpack.c.l.b16 %v1010
    %v1104 = vunpack.c.h.b16 %v1010
    %v1105 = vunpack.c.l.b16 %v1011
    %v1106 = vunpack.c.h.b16 %v1011
    %v1107 = vunpack.c.l.b16 %v1012
    %v1108 = vunpack.c.h.b16 %v1012
    %v1109 = vunpack.c.l.b16 %v1013
    %v1110 = vunpack.c.h.b16 %v1013
    %v1111 = vunpack.c.l.b16 %v1014
    %v1112 = vunpack.c.h.b16 %v1014
    %v1113 = vunpack.c.l.b16 %v1015
    %v1114 = vunpack.c.h.b16 %v1015
    %v1115 = vunpack.c.l.b16 %v1016
    %v1116 = vunpack.c.h.b16 %v1016
    %v1117 = vunpack.c.l.b16 %v1017
    %v1118 = vunpack.c.h.b16 %v1017
    %v1119 = vunpack.c.l.b16 %v1018
    %v1120 = vunpack.c.h.b16 %v1018
    %v1121 = vunpack.c.l.b16 %v1019
    %v1122 = vunpack.c.h.b16 %v1019
    %v1123 = vunpack.c.l.b16 %v1020
    %v1124 = vunpack.c.h.b16 %v1020
    %v1125 = vpack.c.b16 %v1063, %v1061
    %v1126 = vpack.c.b16 %v1064, %v1062
    %v1127 = vpack.c.b16 %v1067, %v1065
    %v1128 = vpack.c.b16 %v1068, %v1066
    %v1129 = vpack.c.b16 %v1071, %v1069
    %v1130 = vpack.c.b16 %v1072, %v1070
    %v1131 = vpack.c.b16 %v1075, %v1073
    %v1132 = vpack.c.b16 %v1076, %v1074
    %v1133 = vpack.c.b16 %v1079, %v1077
    %v1134 = vpack.c.b16 %v1080, %v1078
    %v1135 = vpack.c.b16 %v1083, %v1081
    %v1136 = vpack.c.b16 %v1084, %v1082
    %v1137 = vpack.c.b16 %v1087, %v1085
    %v1138 = vpack.c.b16 %v1088, %v1086
    %v1139 = vpack.c.b16 %v1091, %v1089
    %v1140 = vpack.c.b16 %v1092, %v1090
    %v1141 = vpack.c.b16 %v1095, %v1093
    %v1142 = vpack.c.b16 %v1096, %v1094
    %v1143 = vpack.c.b16 %v1099, %v1097
    %v1144 = vpack.c.b16 %v1100, %v1098
    %v1145 = vpack.c.b16 %v1103, %v1101
    %v1146 = vpack.c.b16 %v1104, %v1102
    %v1147 = vpack.c.b16 %v1107, %v1105
    %v1148 = vpack.c.b16 %v1108, %v1106
    %v1149 = vpack.c.b16 %v1111, %v1109
    %v1150 = vpack.c.b16 %v1112, %v1110
    %v1151 = vpack.c.b16 %v1115, %v1113
    %v1152 = vpack.c.b16 %v1116, %v1114
    %v1153 = vpack.c.b16 %v1119, %v1117
    %v1154 = vpack.c.b16 %v1120, %v1118
    %v1155 = vpack.c.b16 %v1123, %v1121
    %v1156 = vpack.c.b16 %v1124, %v1122
    %1189 = vmatprep.subr.bf16.mxu0 %v1140
    %1190 = vmatpush1.bf16.msra.mxu0 %v1139
    %1191 = vmatprep.subr.bf16.mxu0 %v1138
    %1192 = vmatpush1.bf16.msra.mxu0 %v1137
    %1193 = vmatprep.subr.bf16.mxu0 %v1136
    %1194 = vmatpush1.bf16.msra.mxu0 %v1135
    %1195 = vmatprep.subr.bf16.mxu0 %v1134
    %1196 = vmatpush1.bf16.msra.mxu0 %v1133
    %1197 = vmatprep.subr.bf16.mxu0 %v1132
    %1198 = vmatpush1.bf16.msra.mxu0 %v1131
    %1199 = vmatprep.subr.bf16.mxu0 %v1130
    %1200 = vmatpush1.bf16.msra.mxu0 %v1129
    %1201 = vmatprep.subr.bf16.mxu0 %v1128
    %1202 = vmatpush1.bf16.msra.mxu0 %v1127
    %1203 = vmatprep.subr.bf16.mxu0 %v1126
    %1204 = vmatpush1.bf16.msra.mxu0 %v1125
    %1205 = vmatprep.subr.bf16.mxu0 %v1156
    %1206 = vmatpush2.bf16.msra.mxu0 %v1155
    %1207 = vmatprep.subr.bf16.mxu0 %v1154
    %1208 = vmatpush2.bf16.msra.mxu0 %v1153
    %1209 = vmatprep.subr.bf16.mxu0 %v1152
    %1210 = vmatpush2.bf16.msra.mxu0 %v1151
    %1211 = vmatprep.subr.bf16.mxu0 %v1150
    %1212 = vmatpush2.bf16.msra.mxu0 %v1149
    %1213 = vmatprep.subr.bf16.mxu0 %v1148
    %1214 = vmatpush2.bf16.msra.mxu0 %v1147
    %1215 = vmatprep.subr.bf16.mxu0 %v1146
    %1216 = vmatpush2.bf16.msra.mxu0 %v1145
    %1217 = vmatprep.subr.bf16.mxu0 %v1144
    %1218 = vmatpush2.bf16.msra.mxu0 %v1143
    %1219 = vmatprep.subr.bf16.mxu0 %v1142
    %1220 = vmatpush2.bf16.msra.mxu0 %v1141
    %1221 = vmatprep.mubr.bf16.mxu0 %v1026
    %1222 = vmatmul.mubr.bf16.gmra.mxu0 %v1025
    %v1223 = vpop.f32.mrf.mxu0
    %v1224 = vadd.f32 0.0, %v1223
    %v1225 = vpop.f32.mrf.mxu0
    %v1226 = vadd.f32 0.0, %v1225
    %v1227 = vpop.f32.mrf.mxu0
    %v1228 = vadd.f32 0.0, %v1227
    %v1229 = vpop.f32.mrf.mxu0
    %v1230 = vadd.f32 0.0, %v1229
    %1231 = vdwg.mxu0
    %v1232 = vadd.f32 %v969, %v1224
    %v1233 = vadd.f32 %v971, %v1226
    %v1234 = vadd.f32 %v973, %v1228
    %v1235 = vadd.f32 %v975, %v1230
    %vm1236 = vsmask.f32 2304
    %vm1237 = vsmask.f32 6416
    %vm1238 = vmor %vm1236, %vm1237
    %v1239 = vrot.slane %v499, 5
    %v1240 = vrot.slane %v502, 6
    %v1241 = vor.u32 %v1239, %v1240
    %v1242 = vrot.slane %v1241, 4
    %v1243 = vshrl.u32 %v492, 16
    %v1245 = vrot.slane %v1243, 5
    %v1246 = vrot.slane %v508, 6
    %v1247 = vor.u32 %v1245, %v1246
    %v1248 = vsel %vm1238, %v1242, %v1247
    %v1249 = vrot.slane %v513, 5
    %v1250 = vrot.slane %v516, 6
    %v1251 = vor.u32 %v1249, %v1250
    %v1252 = vrot.slane %v1251, 4
    %v1253 = vshrl.u32 %v494, 16
    %v1255 = vrot.slane %v1253, 5
    %v1256 = vrot.slane %v522, 6
    %v1257 = vor.u32 %v1255, %v1256
    %v1258 = vsel %vm1238, %v1252, %v1257
    %s1259 = scalar_lea.vmem [#allocation7], 768
    %v1260 = vld [vmem:[%s1259] sm:$0xff]
    %v1261 = vld [vmem:[%s1259 + $0x8] sm:$0xff]
    %v1262 = vld [vmem:[%s1259 + $0x10] sm:$0xff]
    %v1263 = vld [vmem:[%s1259 + $0x18] sm:$0xff]
    %v1264 = vld [vmem:[%s1259 + $0x20] sm:$0xff]
    %v1265 = vld [vmem:[%s1259 + $0x28] sm:$0xff]
    %v1266 = vld [vmem:[%s1259 + $0x30] sm:$0xff]
    %v1267 = vld [vmem:[%s1259 + $0x38] sm:$0xff]
    %v1268 = vld [vmem:[%s1259 + $0x40] sm:$0xff]
    %v1269 = vld [vmem:[%s1259 + $0x48] sm:$0xff]
    %v1270 = vld [vmem:[%s1259 + $0x50] sm:$0xff]
    %v1271 = vld [vmem:[%s1259 + $0x58] sm:$0xff]
    %v1272 = vld [vmem:[%s1259 + $0x60] sm:$0xff]
    %v1273 = vld [vmem:[%s1259 + $0x68] sm:$0xff]
    %v1274 = vld [vmem:[%s1259 + $0x70] sm:$0xff]
    %v1275 = vld [vmem:[%s1259 + $0x78] sm:$0xff]
    %v1276 = vld [vmem:[%s1259 + $0x80] sm:$0xff]
    %v1277 = vld [vmem:[%s1259 + $0x88] sm:$0xff]
    %v1278 = vld [vmem:[%s1259 + $0x90] sm:$0xff]
    %v1279 = vld [vmem:[%s1259 + $0x98] sm:$0xff]
    %v1280 = vld [vmem:[%s1259 + $0xa0] sm:$0xff]
    %v1281 = vld [vmem:[%s1259 + $0xa8] sm:$0xff]
    %v1282 = vld [vmem:[%s1259 + $0xb0] sm:$0xff]
    %v1283 = vld [vmem:[%s1259 + $0xb8] sm:$0xff]
    %v1284 = vld [vmem:[%s1259 + $0xc0] sm:$0xff]
    %v1285 = vld [vmem:[%s1259 + $0xc8] sm:$0xff]
    %v1286 = vld [vmem:[%s1259 + $0xd0] sm:$0xff]
    %v1287 = vld [vmem:[%s1259 + $0xd8] sm:$0xff]
    %v1288 = vld [vmem:[%s1259 + $0xe0] sm:$0xff]
    %v1289 = vld [vmem:[%s1259 + $0xe8] sm:$0xff]
    %v1290 = vld [vmem:[%s1259 + $0xf0] sm:$0xff]
    %v1291 = vld [vmem:[%s1259 + $0xf8] sm:$0xff]
    %v1292 = vunpack.c.l.b16 %v1248
    %v1293 = vunpack.c.h.b16 %v1248
    %v1294 = vunpack.c.l.b16 %v1258
    %v1295 = vunpack.c.h.b16 %v1258
    %v1296 = vpack.c.b16 %v1294, %v1292
    %v1297 = vpack.c.b16 %v1295, %v1293
    %v1332 = vunpack.c.l.b16 %v1260
    %v1333 = vunpack.c.h.b16 %v1260
    %v1334 = vunpack.c.l.b16 %v1261
    %v1335 = vunpack.c.h.b16 %v1261
    %v1336 = vunpack.c.l.b16 %v1262
    %v1337 = vunpack.c.h.b16 %v1262
    %v1338 = vunpack.c.l.b16 %v1263
    %v1339 = vunpack.c.h.b16 %v1263
    %v1340 = vunpack.c.l.b16 %v1264
    %v1341 = vunpack.c.h.b16 %v1264
    %v1342 = vunpack.c.l.b16 %v1265
    %v1343 = vunpack.c.h.b16 %v1265
    %v1344 = vunpack.c.l.b16 %v1266
    %v1345 = vunpack.c.h.b16 %v1266
    %v1346 = vunpack.c.l.b16 %v1267
    %v1347 = vunpack.c.h.b16 %v1267
    %v1348 = vunpack.c.l.b16 %v1268
    %v1349 = vunpack.c.h.b16 %v1268
    %v1350 = vunpack.c.l.b16 %v1269
    %v1351 = vunpack.c.h.b16 %v1269
    %v1352 = vunpack.c.l.b16 %v1270
    %v1353 = vunpack.c.h.b16 %v1270
    %v1354 = vunpack.c.l.b16 %v1271
    %v1355 = vunpack.c.h.b16 %v1271
    %v1356 = vunpack.c.l.b16 %v1272
    %v1357 = vunpack.c.h.b16 %v1272
    %v1358 = vunpack.c.l.b16 %v1273
    %v1359 = vunpack.c.h.b16 %v1273
    %v1360 = vunpack.c.l.b16 %v1274
    %v1361 = vunpack.c.h.b16 %v1274
    %v1362 = vunpack.c.l.b16 %v1275
    %v1363 = vunpack.c.h.b16 %v1275
    %v1364 = vunpack.c.l.b16 %v1276
    %v1365 = vunpack.c.h.b16 %v1276
    %v1366 = vunpack.c.l.b16 %v1277
    %v1367 = vunpack.c.h.b16 %v1277
    %v1368 = vunpack.c.l.b16 %v1278
    %v1369 = vunpack.c.h.b16 %v1278
    %v1370 = vunpack.c.l.b16 %v1279
    %v1371 = vunpack.c.h.b16 %v1279
    %v1372 = vunpack.c.l.b16 %v1280
    %v1373 = vunpack.c.h.b16 %v1280
    %v1374 = vunpack.c.l.b16 %v1281
    %v1375 = vunpack.c.h.b16 %v1281
    %v1376 = vunpack.c.l.b16 %v1282
    %v1377 = vunpack.c.h.b16 %v1282
    %v1378 = vunpack.c.l.b16 %v1283
    %v1379 = vunpack.c.h.b16 %v1283
    %v1380 = vunpack.c.l.b16 %v1284
    %v1381 = vunpack.c.h.b16 %v1284
    %v1382 = vunpack.c.l.b16 %v1285
    %v1383 = vunpack.c.h.b16 %v1285
    %v1384 = vunpack.c.l.b16 %v1286
    %v1385 = vunpack.c.h.b16 %v1286
    %v1386 = vunpack.c.l.b16 %v1287
    %v1387 = vunpack.c.h.b16 %v1287
    %v1388 = vunpack.c.l.b16 %v1288
    %v1389 = vunpack.c.h.b16 %v1288
    %v1390 = vunpack.c.l.b16 %v1289
    %v1391 = vunpack.c.h.b16 %v1289
    %v1392 = vunpack.c.l.b16 %v1290
    %v1393 = vunpack.c.h.b16 %v1290
    %v1394 = vunpack.c.l.b16 %v1291
    %v1395 = vunpack.c.h.b16 %v1291
    %v1396 = vpack.c.b16 %v1334, %v1332
    %v1397 = vpack.c.b16 %v1335, %v1333
    %v1398 = vpack.c.b16 %v1338, %v1336
    %v1399 = vpack.c.b16 %v1339, %v1337
    %v1400 = vpack.c.b16 %v1342, %v1340
    %v1401 = vpack.c.b16 %v1343, %v1341
    %v1402 = vpack.c.b16 %v1346, %v1344
    %v1403 = vpack.c.b16 %v1347, %v1345
    %v1404 = vpack.c.b16 %v1350, %v1348
    %v1405 = vpack.c.b16 %v1351, %v1349
    %v1406 = vpack.c.b16 %v1354, %v1352
    %v1407 = vpack.c.b16 %v1355, %v1353
    %v1408 = vpack.c.b16 %v1358, %v1356
    %v1409 = vpack.c.b16 %v1359, %v1357
    %v1410 = vpack.c.b16 %v1362, %v1360
    %v1411 = vpack.c.b16 %v1363, %v1361
    %v1412 = vpack.c.b16 %v1366, %v1364
    %v1413 = vpack.c.b16 %v1367, %v1365
    %v1414 = vpack.c.b16 %v1370, %v1368
    %v1415 = vpack.c.b16 %v1371, %v1369
    %v1416 = vpack.c.b16 %v1374, %v1372
    %v1417 = vpack.c.b16 %v1375, %v1373
    %v1418 = vpack.c.b16 %v1378, %v1376
    %v1419 = vpack.c.b16 %v1379, %v1377
    %v1420 = vpack.c.b16 %v1382, %v1380
    %v1421 = vpack.c.b16 %v1383, %v1381
    %v1422 = vpack.c.b16 %v1386, %v1384
    %v1423 = vpack.c.b16 %v1387, %v1385
    %v1424 = vpack.c.b16 %v1390, %v1388
    %v1425 = vpack.c.b16 %v1391, %v1389
    %v1426 = vpack.c.b16 %v1394, %v1392
    %v1427 = vpack.c.b16 %v1395, %v1393
    %1460 = vmatprep.subr.bf16.mxu0 %v1411
    %1461 = vmatpush1.bf16.msra.mxu0 %v1410
    %1462 = vmatprep.subr.bf16.mxu0 %v1409
    %1463 = vmatpush1.bf16.msra.mxu0 %v1408
    %1464 = vmatprep.subr.bf16.mxu0 %v1407
    %1465 = vmatpush1.bf16.msra.mxu0 %v1406
    %1466 = vmatprep.subr.bf16.mxu0 %v1405
    %1467 = vmatpush1.bf16.msra.mxu0 %v1404
    %1468 = vmatprep.subr.bf16.mxu0 %v1403
    %1469 = vmatpush1.bf16.msra.mxu0 %v1402
    %1470 = vmatprep.subr.bf16.mxu0 %v1401
    %1471 = vmatpush1.bf16.msra.mxu0 %v1400
    %1472 = vmatprep.subr.bf16.mxu0 %v1399
    %1473 = vmatpush1.bf16.msra.mxu0 %v1398
    %1474 = vmatprep.subr.bf16.mxu0 %v1397
    %1475 = vmatpush1.bf16.msra.mxu0 %v1396
    %1476 = vmatprep.subr.bf16.mxu0 %v1427
    %1477 = vmatpush2.bf16.msra.mxu0 %v1426
    %1478 = vmatprep.subr.bf16.mxu0 %v1425
    %1479 = vmatpush2.bf16.msra.mxu0 %v1424
    %1480 = vmatprep.subr.bf16.mxu0 %v1423
    %1481 = vmatpush2.bf16.msra.mxu0 %v1422
    %1482 = vmatprep.subr.bf16.mxu0 %v1421
    %1483 = vmatpush2.bf16.msra.mxu0 %v1420
    %1484 = vmatprep.subr.bf16.mxu0 %v1419
    %1485 = vmatpush2.bf16.msra.mxu0 %v1418
    %1486 = vmatprep.subr.bf16.mxu0 %v1417
    %1487 = vmatpush2.bf16.msra.mxu0 %v1416
    %1488 = vmatprep.subr.bf16.mxu0 %v1415
    %1489 = vmatpush2.bf16.msra.mxu0 %v1414
    %1490 = vmatprep.subr.bf16.mxu0 %v1413
    %1491 = vmatpush2.bf16.msra.mxu0 %v1412
    %1492 = vmatprep.mubr.bf16.mxu0 %v1297
    %1493 = vmatmul.mubr.bf16.gmra.mxu0 %v1296
    %v1494 = vpop.f32.mrf.mxu0
    %v1495 = vadd.f32 0.0, %v1494
    %v1496 = vpop.f32.mrf.mxu0
    %v1497 = vadd.f32 0.0, %v1496
    %v1498 = vpop.f32.mrf.mxu0
    %v1499 = vadd.f32 0.0, %v1498
    %v1500 = vpop.f32.mrf.mxu0
    %v1501 = vadd.f32 0.0, %v1500
    %1502 = vdwg.mxu0
    %v1503 = vadd.f32 %v1232, %v1495
    %v1504 = vadd.f32 %v1233, %v1497
    %v1505 = vadd.f32 %v1234, %v1499
    %v1506 = vadd.f32 %v1235, %v1501
    %vm1507 = vcmask 1041408
    %vm1508 = vcmask 1045508
    %vm1509 = vmor %vm1507, %vm1508
    %v1510 = vrot.slane %v491, 6
    %v1511 = vrot.slane %v1510, 4
    %v1512 = vrot.slane %v492, 6
    %v1513 = vsel %vm1509, %v1511, %v1512
    %v1514 = vrot.slane %v493, 6
    %v1515 = vrot.slane %v1514, 4
    %v1516 = vrot.slane %v494, 6
    %v1517 = vsel %vm1509, %v1515, %v1516
    %s1518 = scalar_lea.vmem [#allocation7], 1024
    %v1519 = vld [vmem:[%s1518] sm:$0xff]
    %v1520 = vld [vmem:[%s1518 + $0x8] sm:$0xff]
    %v1521 = vld [vmem:[%s1518 + $0x10] sm:$0xff]
    %v1522 = vld [vmem:[%s1518 + $0x18] sm:$0xff]
    %v1523 = vld [vmem:[%s1518 + $0x20] sm:$0xff]
    %v1524 = vld [vmem:[%s1518 + $0x28] sm:$0xff]
    %v1525 = vld [vmem:[%s1518 + $0x30] sm:$0xff]
    %v1526 = vld [vmem:[%s1518 + $0x38] sm:$0xff]
    %v1527 = vld [vmem:[%s1518 + $0x40] sm:$0xff]
    %v1528 = vld [vmem:[%s1518 + $0x48] sm:$0xff]
    %v1529 = vld [vmem:[%s1518 + $0x50] sm:$0xff]
    %v1530 = vld [vmem:[%s1518 + $0x58] sm:$0xff]
    %v1531 = vld [vmem:[%s1518 + $0x60] sm:$0xff]
    %v1532 = vld [vmem:[%s1518 + $0x68] sm:$0xff]
    %v1533 = vld [vmem:[%s1518 + $0x70] sm:$0xff]
    %v1534 = vld [vmem:[%s1518 + $0x78] sm:$0xff]
    %v1535 = vld [vmem:[%s1518 + $0x80] sm:$0xff]
    %v1536 = vld [vmem:[%s1518 + $0x88] sm:$0xff]
    %v1537 = vld [vmem:[%s1518 + $0x90] sm:$0xff]
    %v1538 = vld [vmem:[%s1518 + $0x98] sm:$0xff]
    %v1539 = vld [vmem:[%s1518 + $0xa0] sm:$0xff]
    %v1540 = vld [vmem:[%s1518 + $0xa8] sm:$0xff]
    %v1541 = vld [vmem:[%s1518 + $0xb0] sm:$0xff]
    %v1542 = vld [vmem:[%s1518 + $0xb8] sm:$0xff]
    %v1543 = vld [vmem:[%s1518 + $0xc0] sm:$0xff]
    %v1544 = vld [vmem:[%s1518 + $0xc8] sm:$0xff]
    %v1545 = vld [vmem:[%s1518 + $0xd0] sm:$0xff]
    %v1546 = vld [vmem:[%s1518 + $0xd8] sm:$0xff]
    %v1547 = vld [vmem:[%s1518 + $0xe0] sm:$0xff]
    %v1548 = vld [vmem:[%s1518 + $0xe8] sm:$0xff]
    %v1549 = vld [vmem:[%s1518 + $0xf0] sm:$0xff]
    %v1550 = vld [vmem:[%s1518 + $0xf8] sm:$0xff]
    %v1551 = vunpack.c.l.b16 %v1513
    %v1552 = vunpack.c.h.b16 %v1513
    %v1553 = vunpack.c.l.b16 %v1517
    %v1554 = vunpack.c.h.b16 %v1517
    %v1555 = vpack.c.b16 %v1553, %v1551
    %v1556 = vpack.c.b16 %v1554, %v1552
    %v1591 = vunpack.c.l.b16 %v1519
    %v1592 = vunpack.c.h.b16 %v1519
    %v1593 = vunpack.c.l.b16 %v1520
    %v1594 = vunpack.c.h.b16 %v1520
    %v1595 = vunpack.c.l.b16 %v1521
    %v1596 = vunpack.c.h.b16 %v1521
    %v1597 = vunpack.c.l.b16 %v1522
    %v1598 = vunpack.c.h.b16 %v1522
    %v1599 = vunpack.c.l.b16 %v1523
    %v1600 = vunpack.c.h.b16 %v1523
    %v1601 = vunpack.c.l.b16 %v1524
    %v1602 = vunpack.c.h.b16 %v1524
    %v1603 = vunpack.c.l.b16 %v1525
    %v1604 = vunpack.c.h.b16 %v1525
    %v1605 = vunpack.c.l.b16 %v1526
    %v1606 = vunpack.c.h.b16 %v1526
    %v1607 = vunpack.c.l.b16 %v1527
    %v1608 = vunpack.c.h.b16 %v1527
    %v1609 = vunpack.c.l.b16 %v1528
    %v1610 = vunpack.c.h.b16 %v1528
    %v1611 = vunpack.c.l.b16 %v1529
    %v1612 = vunpack.c.h.b16 %v1529
    %v1613 = vunpack.c.l.b16 %v1530
    %v1614 = vunpack.c.h.b16 %v1530
    %v1615 = vunpack.c.l.b16 %v1531
    %v1616 = vunpack.c.h.b16 %v1531
    %v1617 = vunpack.c.l.b16 %v1532
    %v1618 = vunpack.c.h.b16 %v1532
    %v1619 = vunpack.c.l.b16 %v1533
    %v1620 = vunpack.c.h.b16 %v1533
    %v1621 = vunpack.c.l.b16 %v1534
    %v1622 = vunpack.c.h.b16 %v1534
    %v1623 = vunpack.c.l.b16 %v1535
    %v1624 = vunpack.c.h.b16 %v1535
    %v1625 = vunpack.c.l.b16 %v1536
    %v1626 = vunpack.c.h.b16 %v1536
    %v1627 = vunpack.c.l.b16 %v1537
    %v1628 = vunpack.c.h.b16 %v1537
    %v1629 = vunpack.c.l.b16 %v1538
    %v1630 = vunpack.c.h.b16 %v1538
    %v1631 = vunpack.c.l.b16 %v1539
    %v1632 = vunpack.c.h.b16 %v1539
    %v1633 = vunpack.c.l.b16 %v1540
    %v1634 = vunpack.c.h.b16 %v1540
    %v1635 = vunpack.c.l.b16 %v1541
    %v1636 = vunpack.c.h.b16 %v1541
    %v1637 = vunpack.c.l.b16 %v1542
    %v1638 = vunpack.c.h.b16 %v1542
    %v1639 = vunpack.c.l.b16 %v1543
    %v1640 = vunpack.c.h.b16 %v1543
    %v1641 = vunpack.c.l.b16 %v1544
    %v1642 = vunpack.c.h.b16 %v1544
    %v1643 = vunpack.c.l.b16 %v1545
    %v1644 = vunpack.c.h.b16 %v1545
    %v1645 = vunpack.c.l.b16 %v1546
    %v1646 = vunpack.c.h.b16 %v1546
    %v1647 = vunpack.c.l.b16 %v1547
    %v1648 = vunpack.c.h.b16 %v1547
    %v1649 = vunpack.c.l.b16 %v1548
    %v1650 = vunpack.c.h.b16 %v1548
    %v1651 = vunpack.c.l.b16 %v1549
    %v1652 = vunpack.c.h.b16 %v1549
    %v1653 = vunpack.c.l.b16 %v1550
    %v1654 = vunpack.c.h.b16 %v1550
    %v1655 = vpack.c.b16 %v1593, %v1591
    %v1656 = vpack.c.b16 %v1594, %v1592
    %v1657 = vpack.c.b16 %v1597, %v1595
    %v1658 = vpack.c.b16 %v1598, %v1596
    %v1659 = vpack.c.b16 %v1601, %v1599
    %v1660 = vpack.c.b16 %v1602, %v1600
    %v1661 = vpack.c.b16 %v1605, %v1603
    %v1662 = vpack.c.b16 %v1606, %v1604
    %v1663 = vpack.c.b16 %v1609, %v1607
    %v1664 = vpack.c.b16 %v1610, %v1608
    %v1665 = vpack.c.b16 %v1613, %v1611
    %v1666 = vpack.c.b16 %v1614, %v1612
    %v1667 = vpack.c.b16 %v1617, %v1615
    %v1668 = vpack.c.b16 %v1618, %v1616
    %v1669 = vpack.c.b16 %v1621, %v1619
    %v1670 = vpack.c.b16 %v1622, %v1620
    %v1671 = vpack.c.b16 %v1625, %v1623
    %v1672 = vpack.c.b16 %v1626, %v1624
    %v1673 = vpack.c.b16 %v1629, %v1627
    %v1674 = vpack.c.b16 %v1630, %v1628
    %v1675 = vpack.c.b16 %v1633, %v1631
    %v1676 = vpack.c.b16 %v1634, %v1632
    %v1677 = vpack.c.b16 %v1637, %v1635
    %v1678 = vpack.c.b16 %v1638, %v1636
    %v1679 = vpack.c.b16 %v1641, %v1639
    %v1680 = vpack.c.b16 %v1642, %v1640
    %v1681 = vpack.c.b16 %v1645, %v1643
    %v1682 = vpack.c.b16 %v1646, %v1644
    %v1683 = vpack.c.b16 %v1649, %v1647
    %v1684 = vpack.c.b16 %v1650, %v1648
    %v1685 = vpack.c.b16 %v1653, %v1651
    %v1686 = vpack.c.b16 %v1654, %v1652
    %1719 = vmatprep.subr.bf16.mxu0 %v1670
    %1720 = vmatpush1.bf16.msra.mxu0 %v1669
    %1721 = vmatprep.subr.bf16.mxu0 %v1668
    %1722 = vmatpush1.bf16.msra.mxu0 %v1667
    %1723 = vmatprep.subr.bf16.mxu0 %v1666
    %1724 = vmatpush1.bf16.msra.mxu0 %v1665
    %1725 = vmatprep.subr.bf16.mxu0 %v1664
    %1726 = vmatpush1.bf16.msra.mxu0 %v1663
    %1727 = vmatprep.subr.bf16.mxu0 %v1662
    %1728 = vmatpush1.bf16.msra.mxu0 %v1661
    %1729 = vmatprep.subr.bf16.mxu0 %v1660
    %1730 = vmatpush1.bf16.msra.mxu0 %v1659
    %1731 = vmatprep.subr.bf16.mxu0 %v1658
    %1732 = vmatpush1.bf16.msra.mxu0 %v1657
    %1733 = vmatprep.subr.bf16.mxu0 %v1656
    %1734 = vmatpush1.bf16.msra.mxu0 %v1655
    %1735 = vmatprep.subr.bf16.mxu0 %v1686
    %1736 = vmatpush2.bf16.msra.mxu0 %v1685
    %1737 = vmatprep.subr.bf16.mxu0 %v1684
    %1738 = vmatpush2.bf16.msra.mxu0 %v1683
    %1739 = vmatprep.subr.bf16.mxu0 %v1682
    %1740 = vmatpush2.bf16.msra.mxu0 %v1681
    %1741 = vmatprep.subr.bf16.mxu0 %v1680
    %1742 = vmatpush2.bf16.msra.mxu0 %v1679
    %1743 = vmatprep.subr.bf16.mxu0 %v1678
    %1744 = vmatpush2.bf16.msra.mxu0 %v1677
    %1745 = vmatprep.subr.bf16.mxu0 %v1676
    %1746 = vmatpush2.bf16.msra.mxu0 %v1675
    %1747 = vmatprep.subr.bf16.mxu0 %v1674
    %1748 = vmatpush2.bf16.msra.mxu0 %v1673
    %1749 = vmatprep.subr.bf16.mxu0 %v1672
    %1750 = vmatpush2.bf16.msra.mxu0 %v1671
    %1751 = vmatprep.mubr.bf16.mxu0 %v1556
    %1752 = vmatmul.mubr.bf16.gmra.mxu0 %v1555
    %v1753 = vpop.f32.mrf.mxu0
    %v1754 = vadd.f32 0.0, %v1753
    %v1755 = vpop.f32.mrf.mxu0
    %v1756 = vadd.f32 0.0, %v1755
    %v1757 = vpop.f32.mrf.mxu0
    %v1758 = vadd.f32 0.0, %v1757
    %v1759 = vpop.f32.mrf.mxu0
    %v1760 = vadd.f32 0.0, %v1759
    %1761 = vdwg.mxu0
    %v1762 = vadd.f32 %v1503, %v1754
    %v1763 = vadd.f32 %v1504, %v1756
    %v1764 = vadd.f32 %v1505, %v1758
    %v1765 = vadd.f32 %v1506, %v1760
    %v1766 = vld [vmem:[%s8] sm:$0x3]
    %v1768 = vlaneseq
    %v1769 = vshrl.u32 %v1768, 7
    %v1770 = vsub.s32 0, %v1769
    %v1771 = vrot.slane %v1766, %v1770
    %v1772 = vlaneseq
    %v1773 = vshrl.u32 %v1772, 7
    %v1774 = vsub.s32 1, %v1773
    %v1775 = vrot.slane %v1766, %v1774
    %v1778 = vadd.f32 %v1762, %v1771
    %v1779 = vadd.f32 %v1763, %v1775
    %v1780 = vadd.f32 %v1764, %v1771
    %v1781 = vadd.f32 %v1765, %v1775
    %v1782 = vxor.u32 %v1779, 2147483648
    %v1783 = vxor.u32 %v1781, 2147483648
    %v1784 = vmul.f32 %v1782, 1.442695
    %v1785 = vpow.pop %v1784
    %v1786 = vmul.f32 %v1783, 1.442695
    %v1787 = vpow.pop %v1786
    %v1788 = vadd.f32 %v1785, 1.0
    %v1789 = vadd.f32 %v1787, 1.0
    %v1790 = vrcp.pop %v1788
    %v1791 = vmul.f32 1.0, %v1790
    %v1792 = vrcp.pop %v1789
    %v1793 = vmul.f32 1.0, %v1792
    %v1794 = vmul.f32 %v1778, %v1791
    %v1795 = vmul.f32 %v1780, %v1793
    %v1796 = vadd.f32 %v1794, %v225
    %v1797 = vadd.f32 %v1795, %v228
    %v1798 = vmul.f32 %v1796, 0.70710677
    %v1799 = vmul.f32 %v1797, 0.70710677
    %v1800 = vpack.c.bf16 %v1798, %v1798
    %v1801 = vpack.c.bf16 %v1799, %v1799
    %v1802 = vld [vmem:[#allocation2] sm:$0xf]
    %v1803 = vld [vmem:[#allocation2 + $0x4] sm:$0xf]
    %v1804 = vld [vmem:[#allocation2 + $0x8] sm:$0xf]
    %v1805 = vld [vmem:[#allocation2 + $0xc] sm:$0xf]
    %v1806 = vld [vmem:[#allocation2 + $0x10] sm:$0xf]
    %v1807 = vld [vmem:[#allocation2 + $0x14] sm:$0xf]
    %v1808 = vld [vmem:[#allocation2 + $0x18] sm:$0xf]
    %v1809 = vld [vmem:[#allocation2 + $0x1c] sm:$0xf]
    %v1810 = vld [vmem:[#allocation2 + $0x20] sm:$0xf]
    %v1811 = vld [vmem:[#allocation2 + $0x24] sm:$0xf]
    %v1812 = vld [vmem:[#allocation2 + $0x28] sm:$0xf]
    %v1813 = vld [vmem:[#allocation2 + $0x2c] sm:$0xf]
    %v1814 = vld [vmem:[#allocation2 + $0x30] sm:$0xf]
    %v1815 = vld [vmem:[#allocation2 + $0x34] sm:$0xf]
    %v1816 = vld [vmem:[#allocation2 + $0x38] sm:$0xf]
    %v1817 = vld [vmem:[#allocation2 + $0x3c] sm:$0xf]
    %v1818 = vld [vmem:[#allocation2 + $0x40] sm:$0xf]
    %v1819 = vld [vmem:[#allocation2 + $0x44] sm:$0xf]
    %v1820 = vld [vmem:[#allocation2 + $0x48] sm:$0xf]
    %v1821 = vld [vmem:[#allocation2 + $0x4c] sm:$0xf]
    %v1822 = vld [vmem:[#allocation2 + $0x50] sm:$0xf]
    %v1823 = vld [vmem:[#allocation2 + $0x54] sm:$0xf]
    %v1824 = vld [vmem:[#allocation2 + $0x58] sm:$0xf]
    %v1825 = vld [vmem:[#allocation2 + $0x5c] sm:$0xf]
    %v1826 = vld [vmem:[#allocation2 + $0x60] sm:$0xf]
    %v1827 = vld [vmem:[#allocation2 + $0x64] sm:$0xf]
    %v1828 = vld [vmem:[#allocation2 + $0x68] sm:$0xf]
    %v1829 = vld [vmem:[#allocation2 + $0x6c] sm:$0xf]
    %v1830 = vld [vmem:[#allocation2 + $0x70] sm:$0xf]
    %v1831 = vld [vmem:[#allocation2 + $0x74] sm:$0xf]
    %v1832 = vld [vmem:[#allocation2 + $0x78] sm:$0xf]
    %v1833 = vld [vmem:[#allocation2 + $0x7c] sm:$0xf]
    %v1850 = vunpack.c.l.b16 %v1802
    %v1851 = vunpack.c.l.b16 %v1803
    %v1852 = vunpack.c.l.b16 %v1804
    %v1853 = vunpack.c.l.b16 %v1805
    %v1854 = vunpack.c.l.b16 %v1806
    %v1855 = vunpack.c.l.b16 %v1807
    %v1856 = vunpack.c.l.b16 %v1808
    %v1857 = vunpack.c.l.b16 %v1809
    %v1858 = vunpack.c.l.b16 %v1810
    %v1859 = vunpack.c.l.b16 %v1811
    %v1860 = vunpack.c.l.b16 %v1812
    %v1861 = vunpack.c.l.b16 %v1813
    %v1862 = vunpack.c.l.b16 %v1814
    %v1863 = vunpack.c.l.b16 %v1815
    %v1864 = vunpack.c.l.b16 %v1816
    %v1865 = vunpack.c.l.b16 %v1817
    %v1866 = vpack.c.b16 %v1851, %v1850
    %v1867 = vpack.c.b16 %v1853, %v1852
    %v1868 = vpack.c.b16 %v1855, %v1854
    %v1869 = vpack.c.b16 %v1857, %v1856
    %v1870 = vpack.c.b16 %v1859, %v1858
    %v1871 = vpack.c.b16 %v1861, %v1860
    %v1872 = vpack.c.b16 %v1863, %v1862
    %v1873 = vpack.c.b16 %v1865, %v1864
    %1882 = vmatprep.subr.bf16.mxu0 0
    %1883 = vmatpush1.bf16.msra.mxu0 %v1873
    %1884 = vmatprep.subr.bf16.mxu0 0
    %1885 = vmatpush1.bf16.msra.mxu0 %v1872
    %1886 = vmatprep.subr.bf16.mxu0 0
    %1887 = vmatpush1.bf16.msra.mxu0 %v1871
    %1888 = vmatprep.subr.bf16.mxu0 0
    %1889 = vmatpush1.bf16.msra.mxu0 %v1870
    %1890 = vmatprep.subr.bf16.mxu0 0
    %1891 = vmatpush1.bf16.msra.mxu0 %v1869
    %1892 = vmatprep.subr.bf16.mxu0 0
    %1893 = vmatpush1.bf16.msra.mxu0 %v1868
    %1894 = vmatprep.subr.bf16.mxu0 0
    %1895 = vmatpush1.bf16.msra.mxu0 %v1867
    %1896 = vmatprep.subr.bf16.mxu0 0
    %1897 = vmatpush1.bf16.msra.mxu0 %v1866
    %1898 = vmatprep.subr.bf16.mxu0 0
    %1899 = vmatpush2.bf16.msra.mxu0 0
    %1900 = vmatprep.subr.bf16.mxu0 0
    %1901 = vmatpush2.bf16.msra.mxu0 0
    %1902 = vmatprep.subr.bf16.mxu0 0
    %1903 = vmatpush2.bf16.msra.mxu0 0
    %1904 = vmatprep.subr.bf16.mxu0 0
    %1905 = vmatpush2.bf16.msra.mxu0 0
    %1906 = vmatprep.subr.bf16.mxu0 0
    %1907 = vmatpush2.bf16.msra.mxu0 0
    %1908 = vmatprep.subr.bf16.mxu0 0
    %1909 = vmatpush2.bf16.msra.mxu0 0
    %1910 = vmatprep.subr.bf16.mxu0 0
    %1911 = vmatpush2.bf16.msra.mxu0 0
    %1912 = vmatprep.subr.bf16.mxu0 0
    %1913 = vmatpush2.bf16.msra.mxu0 0
    %1914 = vmatprep.mubr.bf16.mxu0 0
    %1915 = vmatmul.mubr.bf16.gmra.mxu0 %v1800
    %v1916 = vpop.f32.mrf.mxu0
    %v1917 = vadd.f32 0.0, %v1916
    %v1918 = vpop.f32.mrf.mxu0
    %v1919 = vpop.f32.mrf.mxu0
    %v1920 = vpop.f32.mrf.mxu0
    %1921 = vdwg.mxu0
    %v1938 = vunpack.c.l.b16 %v1818
    %v1939 = vunpack.c.l.b16 %v1819
    %v1940 = vunpack.c.l.b16 %v1820
    %v1941 = vunpack.c.l.b16 %v1821
    %v1942 = vunpack.c.l.b16 %v1822
    %v1943 = vunpack.c.l.b16 %v1823
    %v1944 = vunpack.c.l.b16 %v1824
    %v1945 = vunpack.c.l.b16 %v1825
    %v1946 = vunpack.c.l.b16 %v1826
    %v1947 = vunpack.c.l.b16 %v1827
    %v1948 = vunpack.c.l.b16 %v1828
    %v1949 = vunpack.c.l.b16 %v1829
    %v1950 = vunpack.c.l.b16 %v1830
    %v1951 = vunpack.c.l.b16 %v1831
    %v1952 = vunpack.c.l.b16 %v1832
    %v1953 = vunpack.c.l.b16 %v1833
    %v1954 = vpack.c.b16 %v1939, %v1938
    %v1955 = vpack.c.b16 %v1941, %v1940
    %v1956 = vpack.c.b16 %v1943, %v1942
    %v1957 = vpack.c.b16 %v1945, %v1944
    %v1958 = vpack.c.b16 %v1947, %v1946
    %v1959 = vpack.c.b16 %v1949, %v1948
    %v1960 = vpack.c.b16 %v1951, %v1950
    %v1961 = vpack.c.b16 %v1953, %v1952
    %1970 = vmatprep.subr.bf16.mxu0 0
    %1971 = vmatpush1.bf16.msra.mxu0 %v1961
    %1972 = vmatprep.subr.bf16.mxu0 0
    %1973 = vmatpush1.bf16.msra.mxu0 %v1960
    %1974 = vmatprep.subr.bf16.mxu0 0
    %1975 = vmatpush1.bf16.msra.mxu0 %v1959
    %1976 = vmatprep.subr.bf16.mxu0 0
    %1977 = vmatpush1.bf16.msra.mxu0 %v1958
    %1978 = vmatprep.subr.bf16.mxu0 0
    %1979 = vmatpush1.bf16.msra.mxu0 %v1957
    %1980 = vmatprep.subr.bf16.mxu0 0
    %1981 = vmatpush1.bf16.msra.mxu0 %v1956
    %1982 = vmatprep.subr.bf16.mxu0 0
    %1983 = vmatpush1.bf16.msra.mxu0 %v1955
    %1984 = vmatprep.subr.bf16.mxu0 0
    %1985 = vmatpush1.bf16.msra.mxu0 %v1954
    %1986 = vmatprep.subr.bf16.mxu0 0
    %1987 = vmatpush2.bf16.msra.mxu0 0
    %1988 = vmatprep.subr.bf16.mxu0 0
    %1989 = vmatpush2.bf16.msra.mxu0 0
    %1990 = vmatprep.subr.bf16.mxu0 0
    %1991 = vmatpush2.bf16.msra.mxu0 0
    %1992 = vmatprep.subr.bf16.mxu0 0
    %1993 = vmatpush2.bf16.msra.mxu0 0
    %1994 = vmatprep.subr.bf16.mxu0 0
    %1995 = vmatpush2.bf16.msra.mxu0 0
    %1996 = vmatprep.subr.bf16.mxu0 0
    %1997 = vmatpush2.bf16.msra.mxu0 0
    %1998 = vmatprep.subr.bf16.mxu0 0
    %1999 = vmatpush2.bf16.msra.mxu0 0
    %2000 = vmatprep.subr.bf16.mxu0 0
    %2001 = vmatpush2.bf16.msra.mxu0 0
    %2002 = vmatprep.mubr.bf16.mxu0 0
    %2003 = vmatmul.mubr.bf16.gmra.mxu0 %v1801
    %v2004 = vpop.f32.mrf.mxu0
    %v2005 = vadd.f32 0.0, %v2004
    %v2006 = vpop.f32.mrf.mxu0
    %v2007 = vpop.f32.mrf.mxu0
    %v2008 = vpop.f32.mrf.mxu0
    %2009 = vdwg.mxu0
    %v2010 = vlaneseq
    %v2011 = vand.u32 %v2010, 127
    %vm2012 = vcmp.lt.s32.totalorder %v2011, 16
    %v2013 = vsel %vm2012, 1, 0
    %vm2014 = vcmp.eq.s32.totalorder %v2013, 1
    %v2015 = vsel %vm2014, %v1917, -1e+30
    %v2016 = vsel %vm2014, %v2005, -1e+30
    %2017 = vmax.xlane.f32.xlu0 %v2015
    %v2018 = vpop.xlane.xlu0 %2017
    %2019 = vmax.xlane.f32.xlu0 %v2016
    %v2020 = vpop.xlane.xlu0 %2019
    %v2021 = vsub.f32 %v2015, %v2018
    %v2022 = vsub.f32 %v2016, %v2020
    %v2023 = vmul.f32 %v2021, 1.442695
    %v2024 = vpow.pop %v2023
    %v2025 = vmul.f32 %v2022, 1.442695
    %v2026 = vpow.pop %v2025
    %2027 = vadd.xlane.f32.xlu0 %v2024
    %v2028 = vpop.xlane.xlu0 %2027
    %2029 = vadd.xlane.f32.xlu0 %v2026
    %v2030 = vpop.xlane.xlu0 %2029
    %v2031 = vrcp.pop %v2028
    %v2032 = vmul.f32 %v2024, %v2031
    %v2033 = vrcp.pop %v2030
    %v2034 = vmul.f32 %v2026, %v2033
    %2035 = vst [vmem:[#allocation13] sm:$0xff] %v2032
    %2036 = vst [vmem:[#allocation13 + $0x8] sm:$0xff] %v2034
    %v2037 = vpack.c.bf16 %v2032, %v2032
    %v2038 = vpack.c.bf16 %v2034, %v2034
    %2039 = vmatprep.subr.bf16.mxu0 0
    %2040 = vmatpush1.bf16.xpose.msra.mxu0 %v1873
    %2041 = vmatprep.subr.bf16.mxu0 0
    %2042 = vmatpush1.bf16.xpose.msra.mxu0 %v1872
    %2043 = vmatprep.subr.bf16.mxu0 0
    %2044 = vmatpush1.bf16.xpose.msra.mxu0 %v1871
    %2045 = vmatprep.subr.bf16.mxu0 0
    %2046 = vmatpush1.bf16.xpose.msra.mxu0 %v1870
    %2047 = vmatprep.subr.bf16.mxu0 0
    %2048 = vmatpush1.bf16.xpose.msra.mxu0 %v1869
    %2049 = vmatprep.subr.bf16.mxu0 0
    %2050 = vmatpush1.bf16.xpose.msra.mxu0 %v1868
    %2051 = vmatprep.subr.bf16.mxu0 0
    %2052 = vmatpush1.bf16.xpose.msra.mxu0 %v1867
    %2053 = vmatprep.subr.bf16.mxu0 0
    %2054 = vmatpush1.bf16.xpose.msra.mxu0 %v1866
    %2055 = vmatprep.subr.bf16.mxu0 0
    %2056 = vmatpush2.bf16.xpose.msra.mxu0 0
    %2057 = vmatprep.subr.bf16.mxu0 0
    %2058 = vmatpush2.bf16.xpose.msra.mxu0 0
    %2059 = vmatprep.subr.bf16.mxu0 0
    %2060 = vmatpush2.bf16.xpose.msra.mxu0 0
    %2061 = vmatprep.subr.bf16.mxu0 0
    %2062 = vmatpush2.bf16.xpose.msra.mxu0 0
    %2063 = vmatprep.subr.bf16.mxu0 0
    %2064 = vmatpush2.bf16.xpose.msra.mxu0 0
    %2065 = vmatprep.subr.bf16.mxu0 0
    %2066 = vmatpush2.bf16.xpose.msra.mxu0 0
    %2067 = vmatprep.subr.bf16.mxu0 0
    %2068 = vmatpush2.bf16.xpose.msra.mxu0 0
    %2069 = vmatprep.subr.bf16.mxu0 0
    %2070 = vmatpush2.bf16.xpose.msra.mxu0 0
    %2071 = vmatprep.mubr.bf16.mxu0 0
    %2072 = vmatmul.mubr.bf16.gmra.mxu0 %v2037
    %v2073 = vpop.f32.mrf.mxu0
    %v2074 = vadd.f32 0.0, %v2073
    %v2075 = vpop.f32.mrf.mxu0
    %v2076 = vpop.f32.mrf.mxu0
    %v2077 = vpop.f32.mrf.mxu0
    %2078 = vdwg.mxu0
    %2079 = vmatprep.subr.bf16.mxu0 0
    %2080 = vmatpush1.bf16.xpose.msra.mxu0 %v1961
    %2081 = vmatprep.subr.bf16.mxu0 0
    %2082 = vmatpush1.bf16.xpose.msra.mxu0 %v1960
    %2083 = vmatprep.subr.bf16.mxu0 0
    %2084 = vmatpush1.bf16.xpose.msra.mxu0 %v1959
    %2085 = vmatprep.subr.bf16.mxu0 0
    %2086 = vmatpush1.bf16.xpose.msra.mxu0 %v1958
    %2087 = vmatprep.subr.bf16.mxu0 0
    %2088 = vmatpush1.bf16.xpose.msra.mxu0 %v1957
    %2089 = vmatprep.subr.bf16.mxu0 0
    %2090 = vmatpush1.bf16.xpose.msra.mxu0 %v1956
    %2091 = vmatprep.subr.bf16.mxu0 0
    %2092 = vmatpush1.bf16.xpose.msra.mxu0 %v1955
    %2093 = vmatprep.subr.bf16.mxu0 0
    %2094 = vmatpush1.bf16.xpose.msra.mxu0 %v1954
    %2095 = vmatprep.subr.bf16.mxu0 0
    %2096 = vmatpush2.bf16.xpose.msra.mxu0 0
    %2097 = vmatprep.subr.bf16.mxu0 0
    %2098 = vmatpush2.bf16.xpose.msra.mxu0 0
    %2099 = vmatprep.subr.bf16.mxu0 0
    %2100 = vmatpush2.bf16.xpose.msra.mxu0 0
    %2101 = vmatprep.subr.bf16.mxu0 0
    %2102 = vmatpush2.bf16.xpose.msra.mxu0 0
    %2103 = vmatprep.subr.bf16.mxu0 0
    %2104 = vmatpush2.bf16.xpose.msra.mxu0 0
    %2105 = vmatprep.subr.bf16.mxu0 0
    %2106 = vmatpush2.bf16.xpose.msra.mxu0 0
    %2107 = vmatprep.subr.bf16.mxu0 0
    %2108 = vmatpush2.bf16.xpose.msra.mxu0 0
    %2109 = vmatprep.subr.bf16.mxu0 0
    %2110 = vmatpush2.bf16.xpose.msra.mxu0 0
    %2111 = vmatprep.mubr.bf16.mxu0 0
    %2112 = vmatmul.mubr.bf16.gmra.mxu0 %v2038
    %v2113 = vpop.f32.mrf.mxu0
    %v2114 = vadd.f32 0.0, %v2113
    %v2115 = vpop.f32.mrf.mxu0
    %v2116 = vpop.f32.mrf.mxu0
    %v2117 = vpop.f32.mrf.mxu0
    %2118 = vdwg.mxu0
    %v2119 = vmul.f32 %v2074, 4.0
    %v2120 = vmul.f32 %v2114, 4.0
    %v2121 = vadd.f32 %v2119, %v1794
    %v2122 = vadd.f32 %v2120, %v1795
    %v2123 = vmul.f32 %v2121, 0.70710677
    %v2124 = vmul.f32 %v2122, 0.70710677
    %v2125 = vadd.f32 %v2123, %v417
    %v2126 = vadd.f32 %v2124, %v420
    %v2127 = vmul.f32 %v2125, 0.70710677
    %v2128 = vmul.f32 %v2126, 0.70710677
    %v2129 = vadd.f32 %v2127, %v238
    %v2130 = vadd.f32 %v2128, %v242
    %v2131 = vld [vmem:[%s13] sm:$0x1]
    %v2133 = vlaneseq
    %v2134 = vshrl.u32 %v2133, 7
    %v2135 = vsub.s32 0, %v2134
    %v2136 = vrot.slane %v2131, %v2135
    %v2138 = vmul.f32 %v2129, %v2136
    %v2139 = vmul.f32 %v2130, %v2136
    %v2140 = vld [vmem:[%s14] sm:$0x1]
    %v2142 = vlaneseq
    %v2143 = vshrl.u32 %v2142, 7
    %v2144 = vsub.s32 0, %v2143
    %v2145 = vrot.slane %v2140, %v2144
    %v2147 = vadd.f32 %v2138, %v2145
    %v2148 = vadd.f32 %v2139, %v2145
    %2149 = vst [vmem:[#allocation11] sm:$0xff] %v2147
    %2150 = vst [vmem:[#allocation11 + $0x8] sm:$0xff] %v2148
    %v2151 = vpack.c.bf16 %v2128, %v2127
    %v2152 = vld [vmem:[%s9] sm:$0xf]
    %v2153 = vld [vmem:[%s9 + $0x4] sm:$0xf]
    %v2154 = vld [vmem:[%s9 + $0x8] sm:$0xf]
    %v2155 = vld [vmem:[%s9 + $0xc] sm:$0xf]
    %v2156 = vld [vmem:[%s9 + $0x10] sm:$0xf]
    %v2157 = vld [vmem:[%s9 + $0x14] sm:$0xf]
    %v2158 = vld [vmem:[%s9 + $0x18] sm:$0xf]
    %v2159 = vld [vmem:[%s9 + $0x1c] sm:$0xf]
    %v2160 = vld [vmem:[%s9 + $0x20] sm:$0xf]
    %v2161 = vld [vmem:[%s9 + $0x24] sm:$0xf]
    %v2162 = vld [vmem:[%s9 + $0x28] sm:$0xf]
    %v2163 = vld [vmem:[%s9 + $0x2c] sm:$0xf]
    %v2164 = vld [vmem:[%s9 + $0x30] sm:$0xf]
    %v2165 = vld [vmem:[%s9 + $0x34] sm:$0xf]
    %v2166 = vld [vmem:[%s9 + $0x38] sm:$0xf]
    %v2167 = vld [vmem:[%s9 + $0x3c] sm:$0xf]
    %v2168 = vld [vmem:[%s10] sm:$0x1]
    %v2170 = vlaneseq
    %v2171 = vshrl.u32 %v2170, 7
    %v2172 = vsub.s32 0, %v2171
    %v2173 = vrot.slane %v2168, %v2172
    %v2191 = vunpack.c.l.b16 %v2152
    %v2192 = vunpack.c.l.b16 %v2153
    %v2193 = vunpack.c.l.b16 %v2154
    %v2194 = vunpack.c.l.b16 %v2155
    %v2195 = vunpack.c.l.b16 %v2156
    %v2196 = vunpack.c.l.b16 %v2157
    %v2197 = vunpack.c.l.b16 %v2158
    %v2198 = vunpack.c.l.b16 %v2159
    %v2199 = vunpack.c.l.b16 %v2160
    %v2200 = vunpack.c.l.b16 %v2161
    %v2201 = vunpack.c.l.b16 %v2162
    %v2202 = vunpack.c.l.b16 %v2163
    %v2203 = vunpack.c.l.b16 %v2164
    %v2204 = vunpack.c.l.b16 %v2165
    %v2205 = vunpack.c.l.b16 %v2166
    %v2206 = vunpack.c.l.b16 %v2167
    %v2207 = vpack.c.b16 %v2192, %v2191
    %v2208 = vpack.c.b16 %v2194, %v2193
    %v2209 = vpack.c.b16 %v2196, %v2195
    %v2210 = vpack.c.b16 %v2198, %v2197
    %v2211 = vpack.c.b16 %v2200, %v2199
    %v2212 = vpack.c.b16 %v2202, %v2201
    %v2213 = vpack.c.b16 %v2204, %v2203
    %v2214 = vpack.c.b16 %v2206, %v2205
    %2223 = vmatprep.subr.bf16.mxu0 0
    %2224 = vmatpush1.bf16.msra.mxu0 %v2214
    %2225 = vmatprep.subr.bf16.mxu0 0
    %2226 = vmatpush1.bf16.msra.mxu0 %v2213
    %2227 = vmatprep.subr.bf16.mxu0 0
    %2228 = vmatpush1.bf16.msra.mxu0 %v2212
    %2229 = vmatprep.subr.bf16.mxu0 0
    %2230 = vmatpush1.bf16.msra.mxu0 %v2211
    %2231 = vmatprep.subr.bf16.mxu0 0
    %2232 = vmatpush1.bf16.msra.mxu0 %v2210
    %2233 = vmatprep.subr.bf16.mxu0 0
    %2234 = vmatpush1.bf16.msra.mxu0 %v2209
    %2235 = vmatprep.subr.bf16.mxu0 0
    %2236 = vmatpush1.bf16.msra.mxu0 %v2208
    %2237 = vmatprep.subr.bf16.mxu0 0
    %2238 = vmatpush1.bf16.msra.mxu0 %v2207
    %2239 = vmatprep.subr.bf16.mxu0 0
    %2240 = vmatpush2.bf16.msra.mxu0 0
    %2241 = vmatprep.subr.bf16.mxu0 0
    %2242 = vmatpush2.bf16.msra.mxu0 0
    %2243 = vmatprep.subr.bf16.mxu0 0
    %2244 = vmatpush2.bf16.msra.mxu0 0
    %2245 = vmatprep.subr.bf16.mxu0 0
    %2246 = vmatpush2.bf16.msra.mxu0 0
    %2247 = vmatprep.subr.bf16.mxu0 0
    %2248 = vmatpush2.bf16.msra.mxu0 0
    %2249 = vmatprep.subr.bf16.mxu0 0
    %2250 = vmatpush2.bf16.msra.mxu0 0
    %2251 = vmatprep.subr.bf16.mxu0 0
    %2252 = vmatpush2.bf16.msra.mxu0 0
    %2253 = vmatprep.subr.bf16.mxu0 0
    %2254 = vmatpush2.bf16.msra.mxu0 0
    %2255 = vmatprep.mubr.bf16.mxu0 0
    %2256 = vmatmul.mubr.bf16.gmra.mxu0 %v2151
    %v2257 = vpop.f32.mrf.mxu0
    %v2258 = vadd.f32 %v2173, %v2257
    %v2259 = vpop.f32.mrf.mxu0
    %v2260 = vpop.f32.mrf.mxu0
    %v2261 = vadd.f32 %v2173, %v2260
    %v2262 = vpop.f32.mrf.mxu0
    %2263 = vdwg.mxu0
    %v2264 = vpack.c.bf16 %v2261, %v2258
    %v2265 = vld [vmem:[#allocation8] sm:$0xff]
    %v2266 = vld [vmem:[#allocation8 + $0x8] sm:$0xff]
    %v2267 = vld [vmem:[#allocation8 + $0x10] sm:$0xff]
    %v2268 = vld [vmem:[#allocation8 + $0x18] sm:$0xff]
    %v2269 = vld [vmem:[#allocation8 + $0x20] sm:$0xff]
    %v2270 = vld [vmem:[#allocation8 + $0x28] sm:$0xff]
    %v2271 = vld [vmem:[#allocation8 + $0x30] sm:$0xff]
    %v2272 = vld [vmem:[#allocation8 + $0x38] sm:$0xff]
    %v2273 = vld [vmem:[%s12] sm:$0x3]
    %v2275 = vlaneseq
    %v2276 = vshrl.u32 %v2275, 7
    %v2277 = vsub.s32 0, %v2276
    %v2278 = vrot.slane %v2273, %v2277
    %v2279 = vlaneseq
    %v2280 = vshrl.u32 %v2279, 7
    %v2281 = vsub.s32 1, %v2280
    %v2282 = vrot.slane %v2273, %v2281
    %v2293 = vunpack.c.l.b16 %v2265
    %v2294 = vunpack.c.h.b16 %v2265
    %v2295 = vunpack.c.l.b16 %v2266
    %v2296 = vunpack.c.h.b16 %v2266
    %v2297 = vunpack.c.l.b16 %v2267
    %v2298 = vunpack.c.h.b16 %v2267
    %v2299 = vunpack.c.l.b16 %v2268
    %v2300 = vunpack.c.h.b16 %v2268
    %v2301 = vunpack.c.l.b16 %v2269
    %v2302 = vunpack.c.h.b16 %v2269
    %v2303 = vunpack.c.l.b16 %v2270
    %v2304 = vunpack.c.h.b16 %v2270
    %v2305 = vunpack.c.l.b16 %v2271
    %v2306 = vunpack.c.h.b16 %v2271
    %v2307 = vunpack.c.l.b16 %v2272
    %v2308 = vunpack.c.h.b16 %v2272
    %v2309 = vpack.c.b16 %v2295, %v2293
    %v2310 = vpack.c.b16 %v2296, %v2294
    %v2311 = vpack.c.b16 %v2299, %v2297
    %v2312 = vpack.c.b16 %v2300, %v2298
    %v2313 = vpack.c.b16 %v2303, %v2301
    %v2314 = vpack.c.b16 %v2304, %v2302
    %v2315 = vpack.c.b16 %v2307, %v2305
    %v2316 = vpack.c.b16 %v2308, %v2306
    %vm2325 = vcmask 523264
    %v2327 = vsel %vm2325, %v2264, 0
    %2329 = vmatprep.subr.bf16.mxu0 0
    %2330 = vmatpush1.bf16.msra.mxu0 0
    %2331 = vmatprep.subr.bf16.mxu0 0
    %2332 = vmatpush1.bf16.msra.mxu0 0
    %2333 = vmatprep.subr.bf16.mxu0 0
    %2334 = vmatpush1.bf16.msra.mxu0 0
    %2335 = vmatprep.subr.bf16.mxu0 0
    %2336 = vmatpush1.bf16.msra.mxu0 0
    %2337 = vmatprep.subr.bf16.mxu0 %v2316
    %2338 = vmatpush1.bf16.msra.mxu0 %v2315
    %2339 = vmatprep.subr.bf16.mxu0 %v2314
    %2340 = vmatpush1.bf16.msra.mxu0 %v2313
    %2341 = vmatprep.subr.bf16.mxu0 %v2312
    %2342 = vmatpush1.bf16.msra.mxu0 %v2311
    %2343 = vmatprep.subr.bf16.mxu0 %v2310
    %2344 = vmatpush1.bf16.msra.mxu0 %v2309
    %2345 = vmatprep.subr.bf16.mxu0 0
    %2346 = vmatpush2.bf16.msra.mxu0 0
    %2347 = vmatprep.subr.bf16.mxu0 0
    %2348 = vmatpush2.bf16.msra.mxu0 0
    %2349 = vmatprep.subr.bf16.mxu0 0
    %2350 = vmatpush2.bf16.msra.mxu0 0
    %2351 = vmatprep.subr.bf16.mxu0 0
    %2352 = vmatpush2.bf16.msra.mxu0 0
    %2353 = vmatprep.subr.bf16.mxu0 0
    %2354 = vmatpush2.bf16.msra.mxu0 0
    %2355 = vmatprep.subr.bf16.mxu0 0
    %2356 = vmatpush2.bf16.msra.mxu0 0
    %2357 = vmatprep.subr.bf16.mxu0 0
    %2358 = vmatpush2.bf16.msra.mxu0 0
    %2359 = vmatprep.subr.bf16.mxu0 0
    %2360 = vmatpush2.bf16.msra.mxu0 0
    %2361 = vmatprep.mubr.bf16.mxu0 0
    %2362 = vmatmul.mubr.bf16.gmra.mxu0 %v2327
    %v2363 = vpop.f32.mrf.mxu0
    %v2364 = vadd.f32 %v2278, %v2363
    %v2365 = vpop.f32.mrf.mxu0
    %v2366 = vadd.f32 %v2282, %v2365
    %v2367 = vpop.f32.mrf.mxu0
    %v2368 = vadd.f32 %v2278, %v2367
    %v2369 = vpop.f32.mrf.mxu0
    %v2370 = vadd.f32 %v2282, %v2369
    %2371 = vdwg.mxu0
    %2372 = vst [vmem:[#allocation10] sm:$0xff] %v2364
    %2373 = vst [vmem:[#allocation10 + $0x8] sm:$0xff] %v2366
    %2374 = vst [vmem:[#allocation10 + $0x10] sm:$0xff] %v2368
    %2375 = vst [vmem:[#allocation10 + $0x18] sm:$0xff] %v2370
    // Predicated region
    $region78: #{tpu_custom_call.1} parent=1 // pred_check
      _
    $region79: #{tpu_custom_call.1} parent=1 // pred_check_branch
      %2377 = sbr.rel (0) target = $region81
    $region80: #{tpu_custom_call.1} parent=1 // pred_region
      %s2379 = ssub.s32 512, 512
      %2380 = vsyncadd [#allocation4], %s2379
      %s2381 = sshll.u32 [#allocation10], 4
      %s2382 = int_to_ptr.vmem [resolvable:$true] %s2381
      %2387 = dma.vmem_to_hbm [thread:$0]  %s2382, 512, %s15, [#allocation4], 256, 256, 16
    $region81: #{tpu_custom_call.1} parent=1 // pred_fallthru
      _
    // Predicated region
    $region82: #{tpu_custom_call.1} parent=1 // pred_check
      _
    $region83: #{tpu_custom_call.1} parent=1 // pred_check_branch
      %2389 = sbr.rel (0) target = $region85
    $region84: #{tpu_custom_call.1} parent=1 // pred_region
      %s2391 = ssub.s32 256, 256
      %2392 = vsyncadd [#allocation12], %s2391
      %s2393 = sshll.u32 [#allocation11], 4
      %s2394 = int_to_ptr.vmem [resolvable:$true] %s2393
      %2399 = dma.vmem_to_hbm [thread:$0]  %s2394, 256, %s16, [#allocation12], 128, 128, 8
    $region85: #{tpu_custom_call.1} parent=1 // pred_fallthru
      _
    // Predicated region
    $region86: #{tpu_custom_call.1} parent=1 // pred_check
      _
    $region87: #{tpu_custom_call.1} parent=1 // pred_check_branch
      %2401 = sbr.rel (0) target = $region89
    $region88: #{tpu_custom_call.1} parent=1 // pred_region
      %s2403 = ssub.s32 256, 256
      %2404 = vsyncadd [#allocation12], %s2403
      %s2405 = sshll.u32 [#allocation13], 4
      %s2406 = int_to_ptr.vmem [resolvable:$true] %s2405
      %2411 = dma.vmem_to_hbm [thread:$0]  %s2406, 256, %s17, [#allocation12], 128, 128, 8
    $region89: #{tpu_custom_call.1} parent=1 // pred_fallthru
      _
    // Predicated region
    $region90: #{tpu_custom_call.1} parent=1 // pred_check
      _
    $region91: #{tpu_custom_call.1} parent=1 // pred_check_branch
      %2413 = sbr.rel (0) target = $region93
    $region92: #{tpu_custom_call.1} parent=1 // pred_region
      %2414 = dma.done [#allocation4], 512
    $region93: #{tpu_custom_call.1} parent=1 // pred_fallthru
      _
    // Predicated region
    $region94: #{tpu_custom_call.1} parent=1 // pred_check
      _
    $region95: #{tpu_custom_call.1} parent=1 // pred_check_branch
      %2416 = sbr.rel (0) target = $region97
    $region96: #{tpu_custom_call.1} parent=1 // pred_region
      %2417 = dma.done [#allocation12], 256
    $region97: #{tpu_custom_call.1} parent=1 // pred_fallthru
      _
    // Predicated region
    $region98: #{tpu_custom_call.1} parent=1 // pred_check
      _
    $region99: #{tpu_custom_call.1} parent=1 // pred_check_branch
      %2419 = sbr.rel (0) target = $region101
    $region100: #{tpu_custom_call.1} parent=1 // pred_region
      %2420 = dma.done [#allocation12], 256
    $region101: #{tpu_custom_call.1} parent=1 // pred_fallthru
      _
    %2421 = vsyncpa [#allocation3], 1
    %2422 = vsyncpa [#allocation6], 1
    %2423 = vsyncpa [#allocation9], 1
    %2424 = vsyncpa [#allocation4], 1
    %2425 = vsyncpa [#allocation12], 1

</llo_original>
